<compile_context>
chip_gen: v7x
topology: tpu7x:2x2x1
jax: 0.10.0
libtpu: 0.0.40
codegen_flags: <defaults>
</compile_context>

<pallas_src>
import functools
import math

import jax
import jax.numpy as jnp
from jax.experimental import pallas as pl
from jax.experimental.pallas import tpu as pltpu


# ----------------------------------------------------------------------------
# helpers
# ----------------------------------------------------------------------------
def _swish(v):
    return v * jax.nn.sigmoid(v)


def _bytes(shape, dtype):
    return math.prod(shape) * jnp.dtype(dtype).itemsize


def _vmem_budget(block_bytes):
    """Scoped-VMEM request: double-buffered blocks + headroom, floored/capped."""
    return int(min(max(2 * block_bytes + (16 << 20), 32 << 20), 96 << 20))


def _pick_tile(rows, target=512):
    """Largest multiple-of-8 divisor of `rows` that is <= target, preferring a
    grid with >= 2 steps so the 'parallel' axis can shard across TensorCores."""
    if rows <= 8 or rows % 8 != 0:
        return rows
    candidates = [d for d in range(8, min(rows, target) + 1, 8) if rows % d == 0]
    if not candidates:
        return rows
    multi = [d for d in candidates if rows // d >= 2]
    return max(multi) if multi else max(candidates)


# ----------------------------------------------------------------------------
# stage 1: per-edge projections
# ----------------------------------------------------------------------------
def _edge_in_kernel(compute_dtype,
                    x1_ref, rbf0_ref,
                    w_jk_ref, b_jk_ref, w_rbf1_ref, w_rbf2_ref,
                    w_down_ref, w_rbf_ref,
                    x_ji_ref, xkj_down_ref, rbf_e2_ref):
    H = x_ji_ref.shape[-1]
    x1 = x1_ref[...].astype(compute_dtype)
    rbf0 = rbf0_ref[...].astype(compute_dtype)

    # lin_ji and lin_kj folded into one wider [H, 2H] matmul (packed weights).
    jk = jnp.dot(x1, w_jk_ref[...], preferred_element_type=jnp.float32)
    jk = jk + b_jk_ref[...].astype(jnp.float32)
    x_ji = _swish(jk[:, :H])
    x_kj = _swish(jk[:, H:])

    # rbf = lin_rbf2(lin_rbf1(rbf0))   (bias-free)
    rbf_h = jnp.dot(rbf0, w_rbf1_ref[...], preferred_element_type=jnp.float32)
    rbf = jnp.dot(rbf_h.astype(compute_dtype), w_rbf2_ref[...],
                  preferred_element_type=jnp.float32)
    x_kj = x_kj * rbf

    # x_kj = act(lin_down(x_kj))       (bias-free)
    xkj_down = _swish(jnp.dot(x_kj.astype(compute_dtype), w_down_ref[...],
                              preferred_element_type=jnp.float32))

    # lin_rbf(rbf0), consumed by the output stage for e2.
    rbf_e2 = jnp.dot(rbf0, w_rbf_ref[...], preferred_element_type=jnp.float32)

    x_ji_ref[...] = x_ji.astype(x_ji_ref.dtype)
    xkj_down_ref[...] = xkj_down.astype(xkj_down_ref.dtype)
    rbf_e2_ref[...] = rbf_e2.astype(rbf_e2_ref.dtype)


# ----------------------------------------------------------------------------
# stage 2: per-triplet basis mixing
# ----------------------------------------------------------------------------
def _triplet_kernel(compute_dtype,
                    xkj_g_ref, sbf_ref, t_ref,
                    w_sbf1_ref, w_sbf2_ref, w_t1_ref, w_t2_ref,
                    msg_ref):
    xkj = xkj_g_ref[...].astype(jnp.float32)
    sbf = sbf_ref[...].astype(compute_dtype)
    tor = t_ref[...].astype(compute_dtype)

    sbf_h = jnp.dot(sbf, w_sbf1_ref[...], preferred_element_type=jnp.float32)
    sbf_i = jnp.dot(sbf_h.astype(compute_dtype), w_sbf2_ref[...],
                    preferred_element_type=jnp.float32)
    t_h = jnp.dot(tor, w_t1_ref[...], preferred_element_type=jnp.float32)
    t_i = jnp.dot(t_h.astype(compute_dtype), w_t2_ref[...],
                  preferred_element_type=jnp.float32)

    msg_ref[...] = (xkj * sbf_i * t_i).astype(msg_ref.dtype)


# ----------------------------------------------------------------------------
# stage 3: up-projection, residual stack, outputs
# ----------------------------------------------------------------------------
def _edge_out_kernel(compute_dtype, num_before, num_after, *refs):
    n_res = num_before + num_after
    x_ji_ref, xkj_agg_ref, x1_ref, rbf_e2_ref, w_up_ref = refs[:5]
    res_w = refs[5:5 + 2 * n_res]
    w_lin_ref = refs[5 + 2 * n_res]
    bias_ref = refs[6 + 2 * n_res]
    e1_ref, e2_ref = refs[7 + 2 * n_res], refs[8 + 2 * n_res]

    biases = bias_ref[...].astype(jnp.float32)   # packed (8k, H) bias slab

    def mm(a_f32, w_ref):
        return jnp.dot(a_f32.astype(compute_dtype), w_ref[...],
                       preferred_element_type=jnp.float32)

    def residual(h, layer_idx):
        w1 = res_w[2 * layer_idx]
        w2 = res_w[2 * layer_idx + 1]
        b1 = biases[2 * layer_idx:2 * layer_idx + 1, :]
        b2 = biases[2 * layer_idx + 1:2 * layer_idx + 2, :]
        u = _swish(mm(h, w1) + b1)
        return h + _swish(mm(u, w2) + b2)

    x_kj = _swish(mm(xkj_agg_ref[...].astype(jnp.float32), w_up_ref))
    e1 = x_ji_ref[...].astype(jnp.float32) + x_kj

    for l in range(num_before):
        e1 = residual(e1, l)

    b_lin = biases[2 * n_res:2 * n_res + 1, :]
    e1 = _swish(mm(e1, w_lin_ref) + b_lin) + x1_ref[...].astype(jnp.float32)

    for l in range(num_before, n_res):
        e1 = residual(e1, l)

    e2 = rbf_e2_ref[...].astype(jnp.float32) * e1

    e1_ref[...] = e1.astype(e1_ref.dtype)
    e2_ref[...] = e2.astype(e2_ref.dtype)


# ----------------------------------------------------------------------------
# wrapper
# ----------------------------------------------------------------------------
def update_e_forward(x1, rbf0, sbf, t, idx_kj, idx_ji, params,
                     compute_dtype=jnp.bfloat16, tile_target=512):
    """Pallas implementation of update_e.forward. Weights are stored [in, out]
    (equivalent to PyTorch's x @ W.T). Returns (e1, e2), both float32."""
    E, H = x1.shape
    T = sbf.shape[0]
    R = rbf0.shape[1]
    I = params["w_down"].shape[1]
    cd = compute_dtype

    def row_spec(tile, cols):
        return pl.BlockSpec((tile, cols), lambda i: (i, 0))

    def const_spec(arr):
        return pl.BlockSpec(arr.shape, lambda i: (0, 0))

    # ------------------------- stage 1: per-edge -------------------------
    tile_e = _pick_tile(E, tile_target)
    w_jk = jnp.concatenate([params["w_ji"], params["w_kj"]], axis=1).astype(cd)
    b_jk = jnp.concatenate([params["b_ji"], params["b_kj"]]).reshape(1, 2 * H)
    w_rbf1 = params["w_rbf1"].astype(cd)
    w_rbf2 = params["w_rbf2"].astype(cd)
    w_down = params["w_down"].astype(cd)
    w_rbf = params["w_rbf"].astype(cd)
    Bd = w_rbf1.shape[1]

    s1_weights = [w_jk, b_jk, w_rbf1, w_rbf2, w_down, w_rbf]
    s1_in_specs = ([row_spec(tile_e, H), row_spec(tile_e, R)]
                   + [const_spec(a) for a in s1_weights])
    s1_out_shape = (jax.ShapeDtypeStruct((E, H), jnp.float32),
                    jax.ShapeDtypeStruct((E, I), jnp.float32),
                    jax.ShapeDtypeStruct((E, H), jnp.float32))
    s1_out_specs = [row_spec(tile_e, H), row_spec(tile_e, I), row_spec(tile_e, H)]
    s1_block_bytes = (_bytes((tile_e, H), x1.dtype) + _bytes((tile_e, R), rbf0.dtype)
                      + sum(_bytes(a.shape, a.dtype) for a in s1_weights)
                      + 2 * _bytes((tile_e, H), jnp.float32)
                      + _bytes((tile_e, I), jnp.float32))
    s1_cost = pl.CostEstimate(
        flops=2 * E * (H * 2 * H + R * Bd + Bd * H + H * I + R * H),
        transcendentals=E * (2 * H + I),
        bytes_accessed=(x1.size + rbf0.size) * 4
                       + sum(a.size * a.dtype.itemsize for a in s1_weights)
                       + E * (2 * H + I) * 4)

    x_ji, xkj_down, rbf_e2 = pl.pallas_call(
        functools.partial(_edge_in_kernel, cd),
        out_shape=s1_out_shape,
        grid_spec=pltpu.PrefetchScalarGridSpec(
            num_scalar_prefetch=0,
            grid=(E // tile_e,),
            in_specs=s1_in_specs,
            out_specs=s1_out_specs),
        compiler_params=pltpu.CompilerParams(
            dimension_semantics=("parallel",),
            vmem_limit_bytes=_vmem_budget(s1_block_bytes)),
        cost_estimate=s1_cost,
    )(x1, rbf0, *s1_weights)

    # ------------------------ stage 2: per-triplet ------------------------
    # TODO(synk): fuse the row gather (x_kj[idx_kj]) into the triplet kernel via
    # scalar-prefetch / manual DMA instead of materializing the gathered rows.
    xkj_g = jnp.take(xkj_down, idx_kj, axis=0)

    tile_t = _pick_tile(T, tile_target)
    w_sbf1 = params["w_sbf1"].astype(cd)
    w_sbf2 = params["w_sbf2"].astype(cd)
    w_t1 = params["w_t1"].astype(cd)
    w_t2 = params["w_t2"].astype(cd)
    SR, Ba = w_sbf1.shape
    S2R, Bt = w_t1.shape

    s2_weights = [w_sbf1, w_sbf2, w_t1, w_t2]
    s2_in_specs = ([row_spec(tile_t, I), row_spec(tile_t, SR), row_spec(tile_t, S2R)]
                   + [const_spec(a) for a in s2_weights])
    s2_block_bytes = (_bytes((tile_t, I), jnp.float32)
                      + _bytes((tile_t, SR), sbf.dtype)
                      + _bytes((tile_t, S2R), t.dtype)
                      + sum(_bytes(a.shape, a.dtype) for a in s2_weights)
                      + _bytes((tile_t, I), jnp.float32))
    s2_cost = pl.CostEstimate(
        flops=2 * T * (SR * Ba + Ba * I + S2R * Bt + Bt * I),
        transcendentals=0,
        bytes_accessed=(xkj_g.size + sbf.size + t.size) * 4
                       + sum(a.size * a.dtype.itemsize for a in s2_weights)
                       + T * I * 4)

    msg = pl.pallas_call(
        functools.partial(_triplet_kernel, cd),
        out_shape=jax.ShapeDtypeStruct((T, I), jnp.float32),
        grid_spec=pltpu.PrefetchScalarGridSpec(
            num_scalar_prefetch=0,
            grid=(T // tile_t,),
            in_specs=s2_in_specs,
            out_specs=row_spec(tile_t, I)),
        compiler_params=pltpu.CompilerParams(
            dimension_semantics=("parallel",),
            vmem_limit_bytes=_vmem_budget(s2_block_bytes)),
        cost_estimate=s2_cost,
    )(xkj_g, sbf, t, *s2_weights)

    # TODO(synk): no clean in-kernel Pallas scatter-add; done with XLA .at[].add.
    xkj_agg = jnp.zeros((E, I), jnp.float32).at[idx_ji].add(msg)

    # ------------------------- stage 3: per-edge -------------------------
    nb = len(params["res_before"])
    na = len(params["res_after"])
    n_res = nb + na
    res_ws, bias_rows = [], []
    for lay in params["res_before"] + params["res_after"]:
        res_ws += [lay["w1"].astype(cd), lay["w2"].astype(cd)]
        bias_rows += [lay["b1"], lay["b2"]]
    bias_rows.append(params["b_lin"])
    pad = (-len(bias_rows)) % 8
    bias_pack = jnp.stack(bias_rows + [jnp.zeros_like(params["b_lin"])] * pad)

    w_up = params["w_up"].astype(cd)
    w_lin = params["w_lin"].astype(cd)
    s3_weights = [w_up] + res_ws + [w_lin, bias_pack]
    s3_in_specs = ([row_spec(tile_e, H), row_spec(tile_e, I),
                    row_spec(tile_e, H), row_spec(tile_e, H)]
                   + [const_spec(a) for a in s3_weights])
    s3_out_shape = (jax.ShapeDtypeStruct((E, H), jnp.float32),
                    jax.ShapeDtypeStruct((E, H), jnp.float32))
    s3_out_specs = [row_spec(tile_e, H), row_spec(tile_e, H)]
    s3_block_bytes = (3 * _bytes((tile_e, H), jnp.float32)
                      + _bytes((tile_e, I), jnp.float32)
                      + sum(_bytes(a.shape, a.dtype) for a in s3_weights)
                      + 2 * _bytes((tile_e, H), jnp.float32))
    s3_cost = pl.CostEstimate(
        flops=2 * E * (I * H + (2 * n_res + 1) * H * H),
        transcendentals=E * H * (2 * n_res + 2),
        bytes_accessed=E * (3 * H + I) * 4
                       + sum(a.size * a.dtype.itemsize for a in s3_weights)
                       + 2 * E * H * 4)

    e1, e2 = pl.pallas_call(
        functools.partial(_edge_out_kernel, cd, nb, na),
        out_shape=s3_out_shape,
        grid_spec=pltpu.PrefetchScalarGridSpec(
            num_scalar_prefetch=0,
            grid=(E // tile_e,),
            in_specs=s3_in_specs,
            out_specs=s3_out_specs),
        compiler_params=pltpu.CompilerParams(
            dimension_semantics=("parallel",),
            vmem_limit_bytes=_vmem_budget(s3_block_bytes)),
        cost_estimate=s3_cost,
    )(x_ji, xkj_agg, x1, rbf_e2, *s3_weights)

    return e1, e2


# ----------------------------------------------------------------------------
# pure-JAX reference (mirrors the PyTorch forward)
# ----------------------------------------------------------------------------
def update_e_reference(x1, rbf0, sbf, t, idx_kj, idx_ji, params):
    sw = _swish
    x_ji = sw(x1 @ params["w_ji"] + params["b_ji"])
    x_kj = sw(x1 @ params["w_kj"] + params["b_kj"])
    rbf = (rbf0 @ params["w_rbf1"]) @ params["w_rbf2"]
    x_kj = x_kj * rbf
    x_kj = sw(x_kj @ params["w_down"])
    sbf_e = (sbf @ params["w_sbf1"]) @ params["w_sbf2"]
    x_kj = x_kj[idx_kj] * sbf_e
    t_e = (t @ params["w_t1"]) @ params["w_t2"]
    x_kj = x_kj * t_e
    E = x1.shape[0]
    x_kj = jnp.zeros((E, x_kj.shape[1]), x_kj.dtype).at[idx_ji].add(x_kj)
    x_kj = sw(x_kj @ params["w_up"])
    e1 = x_ji + x_kj
    for lay in params["res_before"]:
        u = sw(e1 @ lay["w1"] + lay["b1"])
        e1 = e1 + sw(u @ lay["w2"] + lay["b2"])
    e1 = sw(e1 @ params["w_lin"] + params["b_lin"]) + x1
    for lay in params["res_after"]:
        u = sw(e1 @ lay["w1"] + lay["b1"])
        e1 = e1 + sw(u @ lay["w2"] + lay["b2"])
    e2 = (rbf0 @ params["w_rbf"]) * e1
    return e1, e2


def init_params(key, *, hidden, int_emb, b_dist, b_angle, b_tor,
                n_sph, n_rad, num_before_skip, num_after_skip):
    def dense(k, fan_in, fan_out):
        bound = 1.0 / math.sqrt(fan_in)
        return jax.random.uniform(k, (fan_in, fan_out), jnp.float32, -bound, bound)

    def bias(k, n):
        return jax.random.uniform(k, (n,), jnp.float32, -0.1, 0.1)

    keys = iter(jax.random.split(key, 64))
    p = {
        "w_rbf1": dense(next(keys), n_rad, b_dist),
        "w_rbf2": dense(next(keys), b_dist, hidden),
        "w_sbf1": dense(next(keys), n_sph * n_rad, b_angle),
        "w_sbf2": dense(next(keys), b_angle, int_emb),
        "w_t1": dense(next(keys), n_sph * n_sph * n_rad, b_tor),
        "w_t2": dense(next(keys), b_tor, int_emb),
        "w_rbf": dense(next(keys), n_rad, hidden),
        "w_ji": dense(next(keys), hidden, hidden),
        "b_ji": bias(next(keys), hidden),
        "w_kj": dense(next(keys), hidden, hidden),
        "b_kj": bias(next(keys), hidden),
        "w_down": dense(next(keys), hidden, int_emb),
        "w_up": dense(next(keys), int_emb, hidden),
        "w_lin": dense(next(keys), hidden, hidden),
        "b_lin": bias(next(keys), hidden),
        "res_before": [],
        "res_after": [],
    }
    for name, n in (("res_before", num_before_skip), ("res_after", num_after_skip)):
        for _ in range(n):
            p[name].append({
                "w1": dense(next(keys), hidden, hidden),
                "b1": bias(next(keys), hidden),
                "w2": dense(next(keys), hidden, hidden),
                "b2": bias(next(keys), hidden),
            })
    return p


def _rel_err(a, b):
    return float(jnp.max(jnp.abs(a - b)) / (jnp.max(jnp.abs(b)) + 1e-8))


if __name__ == "__main__":
    hidden, int_emb = 128, 64          # lane-dense hidden/output dims
    b_dist = b_angle = b_tor = 8
    n_sph, n_rad = 4, 8
    nb, na = 1, 2                      # num_before_skip, num_after_skip
    E, T = 64, 128                     # edges, triplets

    key = jax.random.PRNGKey(0)
    key, k1, k2, k3, k4, k5, k6 = jax.random.split(key, 7)
    x1 = jax.random.normal(k1, (E, hidden), jnp.float32)
    rbf0 = jax.random.normal(k2, (E, n_rad), jnp.float32)
    sbf = jax.random.normal(k3, (T, n_sph * n_rad), jnp.float32)
    tor = jax.random.normal(k4, (T, n_sph * n_sph * n_rad), jnp.float32)
    idx_kj = jax.random.randint(k5, (T,), 0, E)
    idx_ji = jax.random.randint(k6, (T,), 0, E)
    params = init_params(key, hidden=hidden, int_emb=int_emb, b_dist=b_dist,
                         b_angle=b_angle, b_tor=b_tor, n_sph=n_sph, n_rad=n_rad,
                         num_before_skip=nb, num_after_skip=na)

    with jax.default_matmul_precision("highest"):
        e1_ref, e2_ref = update_e_reference(x1, rbf0, sbf, tor, idx_kj, idx_ji, params)
    jax.block_until_ready((e1_ref, e2_ref))

    # Strict correctness check with f32 MXU operands.
    e1_f, e2_f = update_e_forward(x1, rbf0, sbf, tor, idx_kj, idx_ji, params,
                                  compute_dtype=jnp.float32)
    jax.block_until_ready((e1_f, e2_f))
    assert e1_f.shape == (E, hidden) and e2_f.shape == (E, hidden)
    err_f = max(_rel_err(e1_f, e1_ref), _rel_err(e2_f, e2_ref))
    assert err_f < 5e-3, f"f32 path mismatch vs reference: {err_f}"

    # Performance configuration: bf16 MXU operands, f32 accumulation.
    e1_b, e2_b = update_e_forward(x1, rbf0, sbf, tor, idx_kj, idx_ji, params,
                                  compute_dtype=jnp.bfloat16)
    jax.block_until_ready((e1_b, e2_b))
    err_b = max(_rel_err(e1_b, e1_ref), _rel_err(e2_b, e2_ref))
    assert err_b < 8e-2, f"bf16 path mismatch vs reference: {err_b}"

    print("KERNEL_OK")
</pallas_src>

<mosaic_0001>
module attributes {stable_mosaic.version = 11 : i64} {
  func.func @_edge_in_kernel(%arg0: i32, %arg1: memref<32x128xf32, #tpu.memory_space<vmem>>, %arg2: memref<32x8xf32, #tpu.memory_space<vmem>>, %arg3: memref<128x256xf32, #tpu.memory_space<vmem>>, %arg4: memref<1x256xf32, #tpu.memory_space<vmem>>, %arg5: memref<8x8xf32, #tpu.memory_space<vmem>>, %arg6: memref<8x128xf32, #tpu.memory_space<vmem>>, %arg7: memref<128x64xf32, #tpu.memory_space<vmem>>, %arg8: memref<8x128xf32, #tpu.memory_space<vmem>>, %arg9: memref<32x128xf32, #tpu.memory_space<vmem>>, %arg10: memref<32x64xf32, #tpu.memory_space<vmem>>, %arg11: memref<32x128xf32, #tpu.memory_space<vmem>>) attributes {dimension_semantics = [#tpu.dimension_semantics<parallel>], iteration_bounds = array<i64: 2>, scalar_prefetch = 0 : i64, scratch_operands = 0 : i64, tpu.core_type = #tpu.core_type<tc>, window_params = [{transform_indices = @transform_0, window_bounds = array<i64: 32, 128>}, {transform_indices = @transform_1, window_bounds = array<i64: 32, 8>}, {pipeline_mode = #tpu.pipeline_mode<synchronous>, transform_indices = @transform_2, window_bounds = array<i64: 128, 256>}, {pipeline_mode = #tpu.pipeline_mode<synchronous>, transform_indices = @transform_3, window_bounds = array<i64: 1, 256>}, {pipeline_mode = #tpu.pipeline_mode<synchronous>, transform_indices = @transform_4, window_bounds = array<i64: 8, 8>}, {pipeline_mode = #tpu.pipeline_mode<synchronous>, transform_indices = @transform_5, window_bounds = array<i64: 8, 128>}, {pipeline_mode = #tpu.pipeline_mode<synchronous>, transform_indices = @transform_6, window_bounds = array<i64: 128, 64>}, {pipeline_mode = #tpu.pipeline_mode<synchronous>, transform_indices = @transform_7, window_bounds = array<i64: 8, 128>}, {transform_indices = @transform_8, window_bounds = array<i64: 32, 128>}, {transform_indices = @transform_9, window_bounds = array<i64: 32, 64>}, {transform_indices = @transform_10, window_bounds = array<i64: 32, 128>}]} {
    %c0 = arith.constant 0 : index
    %c0_0 = arith.constant 0 : index
    %0 = vector.load %arg1[%c0, %c0_0] : memref<32x128xf32, #tpu.memory_space<vmem>>, vector<32x128xf32>
    %c0_1 = arith.constant 0 : index
    %c0_2 = arith.constant 0 : index
    %1 = vector.load %arg2[%c0_1, %c0_2] : memref<32x8xf32, #tpu.memory_space<vmem>>, vector<32x8xf32>
    %c0_3 = arith.constant 0 : index
    %c0_4 = arith.constant 0 : index
    %2 = vector.load %arg3[%c0_3, %c0_4] : memref<128x256xf32, #tpu.memory_space<vmem>>, vector<128x256xf32>
    %cst = arith.constant dense<0.000000e+00> : vector<32x256xf32>
    %3 = tpu.matmul %0, %2, %cst {dimension_numbers = #tpu.dot_dimension_numbers<[1], [0], [0], [1], [0, 0, 1, 1], [], []>} : vector<32x128xf32>, vector<128x256xf32>, vector<32x256xf32> -> vector<32x256xf32>
    %c0_5 = arith.constant 0 : index
    %c0_6 = arith.constant 0 : index
    %4 = vector.load %arg4[%c0_5, %c0_6] : memref<1x256xf32, #tpu.memory_space<vmem>>, vector<1x256xf32>
    %5 = vector.broadcast %4 : vector<1x256xf32> to vector<32x256xf32>
    %6 = arith.addf %3, %5 : vector<32x256xf32>
    %7 = vector.extract_strided_slice %6 {offsets = [0, 0], sizes = [32, 128], strides = [1, 1]} : vector<32x256xf32> to vector<32x128xf32>
    %8 = arith.negf %7 : vector<32x128xf32>
    %9 = math.exp %8 : vector<32x128xf32>
    %cst_7 = arith.constant 1.000000e+00 : f32
    %10 = vector.broadcast %cst_7 : f32 to vector<32x128xf32>
    %11 = arith.addf %10, %9 : vector<32x128xf32>
    %12 = arith.divf %10, %11 : vector<32x128xf32>
    %13 = arith.mulf %7, %12 : vector<32x128xf32>
    %14 = vector.extract_strided_slice %6 {offsets = [0, 128], sizes = [32, 128], strides = [1, 1]} : vector<32x256xf32> to vector<32x128xf32>
    %15 = arith.negf %14 : vector<32x128xf32>
    %16 = math.exp %15 : vector<32x128xf32>
    %cst_8 = arith.constant 1.000000e+00 : f32
    %17 = vector.broadcast %cst_8 : f32 to vector<32x128xf32>
    %18 = arith.addf %17, %16 : vector<32x128xf32>
    %19 = arith.divf %17, %18 : vector<32x128xf32>
    %20 = arith.mulf %14, %19 : vector<32x128xf32>
    %c0_9 = arith.constant 0 : index
    %c0_10 = arith.constant 0 : index
    %21 = vector.load %arg5[%c0_9, %c0_10] : memref<8x8xf32, #tpu.memory_space<vmem>>, vector<8x8xf32>
    %cst_11 = arith.constant dense<0.000000e+00> : vector<32x8xf32>
    %22 = tpu.matmul %1, %21, %cst_11 {dimension_numbers = #tpu.dot_dimension_numbers<[1], [0], [0], [1], [0, 0, 1, 1], [], []>} : vector<32x8xf32>, vector<8x8xf32>, vector<32x8xf32> -> vector<32x8xf32>
    %c0_12 = arith.constant 0 : index
    %c0_13 = arith.constant 0 : index
    %23 = vector.load %arg6[%c0_12, %c0_13] : memref<8x128xf32, #tpu.memory_space<vmem>>, vector<8x128xf32>
    %cst_14 = arith.constant dense<0.000000e+00> : vector<32x128xf32>
    %24 = tpu.matmul %22, %23, %cst_14 {dimension_numbers = #tpu.dot_dimension_numbers<[1], [0], [0], [1], [0, 0, 1, 1], [], []>} : vector<32x8xf32>, vector<8x128xf32>, vector<32x128xf32> -> vector<32x128xf32>
    %25 = arith.mulf %20, %24 : vector<32x128xf32>
    %c0_15 = arith.constant 0 : index
    %c0_16 = arith.constant 0 : index
    %26 = vector.load %arg7[%c0_15, %c0_16] : memref<128x64xf32, #tpu.memory_space<vmem>>, vector<128x64xf32>
    %cst_17 = arith.constant dense<0.000000e+00> : vector<32x64xf32>
    %27 = tpu.matmul %25, %26, %cst_17 {dimension_numbers = #tpu.dot_dimension_numbers<[1], [0], [0], [1], [0, 0, 1, 1], [], []>} : vector<32x128xf32>, vector<128x64xf32>, vector<32x64xf32> -> vector<32x64xf32>
    %28 = arith.negf %27 : vector<32x64xf32>
    %29 = math.exp %28 : vector<32x64xf32>
    %cst_18 = arith.constant 1.000000e+00 : f32
    %30 = vector.broadcast %cst_18 : f32 to vector<32x64xf32>
    %31 = arith.addf %30, %29 : vector<32x64xf32>
    %32 = arith.divf %30, %31 : vector<32x64xf32>
    %33 = arith.mulf %27, %32 : vector<32x64xf32>
    %c0_19 = arith.constant 0 : index
    %c0_20 = arith.constant 0 : index
    %34 = vector.load %arg8[%c0_19, %c0_20] : memref<8x128xf32, #tpu.memory_space<vmem>>, vector<8x128xf32>
    %cst_21 = arith.constant dense<0.000000e+00> : vector<32x128xf32>
    %35 = tpu.matmul %1, %34, %cst_21 {dimension_numbers = #tpu.dot_dimension_numbers<[1], [0], [0], [1], [0, 0, 1, 1], [], []>} : vector<32x8xf32>, vector<8x128xf32>, vector<32x128xf32> -> vector<32x128xf32>
    %c0_22 = arith.constant 0 : index
    %c0_23 = arith.constant 0 : index
    %36 = vector.load %arg9[%c0_22, %c0_23] : memref<32x128xf32, #tpu.memory_space<vmem>>, vector<32x128xf32>
    tpu.vector_store %arg9[%c0_22, %c0_23], %13 {strides = array<i32>} : memref<32x128xf32, #tpu.memory_space<vmem>>, vector<32x128xf32>,
    %c0_24 = arith.constant 0 : index
    %c0_25 = arith.constant 0 : index
    %37 = vector.load %arg10[%c0_24, %c0_25] : memref<32x64xf32, #tpu.memory_space<vmem>>, vector<32x64xf32>
    tpu.vector_store %arg10[%c0_24, %c0_25], %33 {strides = array<i32>} : memref<32x64xf32, #tpu.memory_space<vmem>>, vector<32x64xf32>,
    %c0_26 = arith.constant 0 : index
    %c0_27 = arith.constant 0 : index
    %38 = vector.load %arg11[%c0_26, %c0_27] : memref<32x128xf32, #tpu.memory_space<vmem>>, vector<32x128xf32>
    tpu.vector_store %arg11[%c0_26, %c0_27], %35 {strides = array<i32>} : memref<32x128xf32, #tpu.memory_space<vmem>>, vector<32x128xf32>,
    return
  }
  func.func @transform_0(%arg0: i32) -> (i32, i32) {
    %c0_i32 = arith.constant 0 : i32
    %c0_i32_0 = arith.constant 0 : i32
    return %arg0, %c0_i32 : i32, i32
  }
  func.func @transform_1(%arg0: i32) -> (i32, i32) {
    %c0_i32 = arith.constant 0 : i32
    %c0_i32_0 = arith.constant 0 : i32
    return %arg0, %c0_i32 : i32, i32
  }
  func.func @transform_2(%arg0: i32) -> (i32, i32) {
    %c0_i32 = arith.constant 0 : i32
    %c0_i32_0 = arith.constant 0 : i32
    %c0_i32_1 = arith.constant 0 : i32
    return %c0_i32, %c0_i32_0 : i32, i32
  }
  func.func @transform_3(%arg0: i32) -> (i32, i32) {
    %c0_i32 = arith.constant 0 : i32
    %c0_i32_0 = arith.constant 0 : i32
    %c0_i32_1 = arith.constant 0 : i32
    return %c0_i32, %c0_i32_0 : i32, i32
  }
  func.func @transform_4(%arg0: i32) -> (i32, i32) {
    %c0_i32 = arith.constant 0 : i32
    %c0_i32_0 = arith.constant 0 : i32
    %c0_i32_1 = arith.constant 0 : i32
    return %c0_i32, %c0_i32_0 : i32, i32
  }
  func.func @transform_5(%arg0: i32) -> (i32, i32) {
    %c0_i32 = arith.constant 0 : i32
    %c0_i32_0 = arith.constant 0 : i32
    %c0_i32_1 = arith.constant 0 : i32
    return %c0_i32, %c0_i32_0 : i32, i32
  }
  func.func @transform_6(%arg0: i32) -> (i32, i32) {
    %c0_i32 = arith.constant 0 : i32
    %c0_i32_0 = arith.constant 0 : i32
    %c0_i32_1 = arith.constant 0 : i32
    return %c0_i32, %c0_i32_0 : i32, i32
  }
  func.func @transform_7(%arg0: i32) -> (i32, i32) {
    %c0_i32 = arith.constant 0 : i32
    %c0_i32_0 = arith.constant 0 : i32
    %c0_i32_1 = arith.constant 0 : i32
    return %c0_i32, %c0_i32_0 : i32, i32
  }
  func.func @transform_8(%arg0: i32) -> (i32, i32) {
    %c0_i32 = arith.constant 0 : i32
    %c0_i32_0 = arith.constant 0 : i32
    return %arg0, %c0_i32 : i32, i32
  }
  func.func @transform_9(%arg0: i32) -> (i32, i32) {
    %c0_i32 = arith.constant 0 : i32
    %c0_i32_0 = arith.constant 0 : i32
    return %arg0, %c0_i32 : i32, i32
  }
  func.func @transform_10(%arg0: i32) -> (i32, i32) {
    %c0_i32 = arith.constant 0 : i32
    %c0_i32_0 = arith.constant 0 : i32
    return %arg0, %c0_i32 : i32, i32
  }
}

</mosaic_0001>

<llo_original>
// kernel: tpu_custom_call.1
$region0: #{tpu_custom_call.1}
  #allocation0 [shape = 'u32[]', space=smem, size = 0x4, offset = 0x4, fixed_abs, tag = 'smem constant byte address 0x4 - core index']
  #allocation1 [shape = 'u32[144,128]{1,0:T(1,128)}', space=vmem, size = 0x12000, scoped, tag = 'internal scratch']
  %s0 = inlined_call_operand.hbm [shape: f32[64,128], index: 0, kind: input, shape index: {}]
  %s1 = inlined_call_operand.vmem [shape: f32[64,8], index: 1, kind: input, shape index: {}]
  %s2 = inlined_call_operand.vmem [shape: f32[128,256], index: 2, kind: input, shape index: {}]
  %s3 = inlined_call_operand.vmem [shape: f32[1,256], index: 3, kind: input, shape index: {}]
  %s4 = inlined_call_operand.vmem [shape: f32[8,8], index: 4, kind: input, shape index: {}]
  %s5 = inlined_call_operand.vmem [shape: f32[8,128], index: 5, kind: input, shape index: {}]
  %s6 = inlined_call_operand.vmem [shape: f32[128,64], index: 6, kind: input, shape index: {}]
  %s7 = inlined_call_operand.vmem [shape: f32[8,128], index: 7, kind: input, shape index: {}]
  %s8 = inlined_call_operand.hbm [shape: f32[64,128], index: 8, kind: output, shape index: {0}]
  %s9 = inlined_call_operand.hbm [shape: f32[64,64], index: 9, kind: output, shape index: {1}]
  %s10 = inlined_call_operand.hbm [shape: f32[64,128], index: 10, kind: output, shape index: {2}]
  %11 = xla_tuple %s8, %s9, %s10
  %s12 = sld [smem:[#allocation0]]
  $region85: #{tpu_custom_call.1} parent=0
    _
  %s14 = ssub.s32 1, %s12
  %s15 = scalar_select 0, %s14, %s12
  $region1: #{tpu_custom_call.1} parent=0
    #allocation2 [shape = 'u8[32768]{0}', space=vmem, size = 0x8000, scoped, tag = 'input window, operand 0']
    #allocation3 [shape = 's32[2]{0}', space=sflag, size = 0x8, scoped, tag = 'scoped memory for tpu_custom_call.1']
    #allocation4 [shape = 's32[2]{0}', space=sflag, size = 0x8, scoped, tag = 'scoped memory for tpu_custom_call.1']
    #allocation5 [shape = 'u8[32768]{0}', space=vmem, size = 0x8000, scoped, tag = 'output window, operand 0']
    #allocation6 [shape = 'u8[32768]{0}', space=vmem, size = 0x8000, scoped, tag = 'output window, operand 1']
    #allocation7 [shape = 's32[2]{0}', space=sflag, size = 0x8, scoped, tag = 'scoped memory for tpu_custom_call.1']
    #allocation8 [shape = 'u8[32768]{0}', space=vmem, size = 0x8000, scoped, tag = 'output window, operand 2']
    %16 = vsyncpa [#allocation3], 0
    %s17 = scalar_lea.sflag [#allocation3], 1
    %18 = vsyncpa %s17, 0
    %19 = vsyncpa [#allocation4], 0
    %s20 = scalar_lea.sflag [#allocation4], 1
    %21 = vsyncpa %s20, 0
    %22 = vsyncpa [#allocation7], 0
    %s23 = scalar_lea.sflag [#allocation7], 1
    %24 = vsyncpa %s23, 0
    loop: start=0, step=1, limit=4
    $region2: #{tpu_custom_call.1} parent=1 // loop_pre_header
      _
    $region3: #{tpu_custom_call.1} parent=1 // loop_header
      %s26 = sphi 0, %s30
      %p27 = scmp.ge.s32.totalorder %s26, 4
      %s36 = sphi 0, %s38
      %s39 = sphi 0, %s36
      %s40 = sphi 0, %s39
      %s56 = sphi 0, %s40
      %s62 = sphi 0, %s64
      %s65 = sphi 0, %s62
      %s66 = sphi 0, %s65
      %s82 = sphi 0, %s66
      %s86 = sphi 0, %s86
      %s88 = sphi 0, %s86
      %s89 = sphi 0, %s88
      %s103 = sphi 0, %s89
      %s107 = sphi 0, %s107
      %s109 = sphi 0, %s107
      %s110 = sphi 0, %s109
      %s124 = sphi 0, %s110
      %s128 = sphi 0, %s128
      %s130 = sphi 0, %s128
      %s131 = sphi 0, %s130
      %s145 = sphi 0, %s131
      %s149 = sphi 0, %s149
      %s151 = sphi 0, %s149
      %s152 = sphi 0, %s151
      %s166 = sphi 0, %s152
      %s170 = sphi 0, %s170
      %s172 = sphi 0, %s170
      %s173 = sphi 0, %s172
      %s187 = sphi 0, %s173
      %s191 = sphi 0, %s191
      %s193 = sphi 0, %s191
      %s194 = sphi 0, %s193
      %s208 = sphi 0, %s194
      %s214 = sphi 0, %s216
      %s217 = sphi 0, %s214
      %s218 = sphi 0, %s217
      %s234 = sphi 0, %s218
      %s240 = sphi 0, %s242
      %s243 = sphi 0, %s240
      %s244 = sphi 0, %s243
      %s260 = sphi 0, %s244
      %s266 = sphi 0, %s268
      %s269 = sphi 0, %s266
      %s270 = sphi 0, %s269
      %s286 = sphi 0, %s270
    $region4: #{tpu_custom_call.1} parent=1 // loop_header_branch
      %29 = sbr.rel (%p27) target = $region8
    $region5: #{tpu_custom_call.1} parent=1 // loop_body
      %s31 = ssub.s32 %s26, 1
      %s32 = ssub.s32 %s26, 2
      %s33 = sadd.s32 %s26, 1
      %s34 = ssub.s32 %s26, %s33
      %p35 = scmp.eq.s32.totalorder %s34, 0
      %s37 = sadd.s32 %s36, 1
      %s38 = scalar_select %p35, %s36, %s37
      %p41 = pneg %p35
      %p42 = scmp.eq.s32.totalorder %s26, 1
      %p43 = por %p41, %p42
      %p44 = scmp.ne.s32.totalorder %s36, %s39
      %p45 = scmp.eq.s32.totalorder %s26, 0
      %p46 = por %p44, %p45
      %p47 = scmp.ne.s32.totalorder %s36, %s39
      %p48 = scmp.eq.s32.totalorder %s31, 1
      %p49 = por %p47, %p48
      %p50 = scmp.ne.s32.totalorder %s39, %s40
      %p51 = scmp.eq.s32.totalorder %s31, 0
      %p52 = por %p50, %p51
      %p53 = scmp.ne.s32.totalorder %s39, %s40
      %p54 = scmp.eq.s32.totalorder %s32, 1
      %p55 = por %p53, %p54
      %p57 = scmp.ne.s32.totalorder %s40, %s56
      %p58 = scmp.eq.s32.totalorder %s32, 0
      %p59 = por %p57, %p58
      %s60 = ssub.s32 %s26, %s33
      %p61 = scmp.eq.s32.totalorder %s60, 0
      %s63 = sadd.s32 %s62, 1
      %s64 = scalar_select %p61, %s62, %s63
      %p67 = pneg %p61
      %p68 = scmp.eq.s32.totalorder %s26, 1
      %p69 = por %p67, %p68
      %p70 = scmp.ne.s32.totalorder %s62, %s65
      %p71 = scmp.eq.s32.totalorder %s26, 0
      %p72 = por %p70, %p71
      %p73 = scmp.ne.s32.totalorder %s62, %s65
      %p74 = scmp.eq.s32.totalorder %s31, 1
      %p75 = por %p73, %p74
      %p76 = scmp.ne.s32.totalorder %s65, %s66
      %p77 = scmp.eq.s32.totalorder %s31, 0
      %p78 = por %p76, %p77
      %p79 = scmp.ne.s32.totalorder %s65, %s66
      %p80 = scmp.eq.s32.totalorder %s32, 1
      %p81 = por %p79, %p80
      %p83 = scmp.ne.s32.totalorder %s66, %s82
      %p84 = scmp.eq.s32.totalorder %s32, 0
      %p85 = por %p83, %p84
      %s87 = sadd.s32 %s86, 1
      %p90 = scmp.eq.s32.totalorder %s26, 1
      %p91 = scmp.ne.s32.totalorder %s86, %s88
      %p92 = scmp.eq.s32.totalorder %s26, 0
      %p93 = por %p91, %p92
      %p94 = scmp.ne.s32.totalorder %s86, %s88
      %p95 = scmp.eq.s32.totalorder %s31, 1
      %p96 = por %p94, %p95
      %p97 = scmp.ne.s32.totalorder %s88, %s89
      %p98 = scmp.eq.s32.totalorder %s31, 0
      %p99 = por %p97, %p98
      %p100 = scmp.ne.s32.totalorder %s88, %s89
      %p101 = scmp.eq.s32.totalorder %s32, 1
      %p102 = por %p100, %p101
      %p104 = scmp.ne.s32.totalorder %s89, %s103
      %p105 = scmp.eq.s32.totalorder %s32, 0
      %p106 = por %p104, %p105
      %s108 = sadd.s32 %s107, 1
      %p111 = scmp.eq.s32.totalorder %s26, 1
      %p112 = scmp.ne.s32.totalorder %s107, %s109
      %p113 = scmp.eq.s32.totalorder %s26, 0
      %p114 = por %p112, %p113
      %p115 = scmp.ne.s32.totalorder %s107, %s109
      %p116 = scmp.eq.s32.totalorder %s31, 1
      %p117 = por %p115, %p116
      %p118 = scmp.ne.s32.totalorder %s109, %s110
      %p119 = scmp.eq.s32.totalorder %s31, 0
      %p120 = por %p118, %p119
      %p121 = scmp.ne.s32.totalorder %s109, %s110
      %p122 = scmp.eq.s32.totalorder %s32, 1
      %p123 = por %p121, %p122
      %p125 = scmp.ne.s32.totalorder %s110, %s124
      %p126 = scmp.eq.s32.totalorder %s32, 0
      %p127 = por %p125, %p126
      %s129 = sadd.s32 %s128, 1
      %p132 = scmp.eq.s32.totalorder %s26, 1
      %p133 = scmp.ne.s32.totalorder %s128, %s130
      %p134 = scmp.eq.s32.totalorder %s26, 0
      %p135 = por %p133, %p134
      %p136 = scmp.ne.s32.totalorder %s128, %s130
      %p137 = scmp.eq.s32.totalorder %s31, 1
      %p138 = por %p136, %p137
      %p139 = scmp.ne.s32.totalorder %s130, %s131
      %p140 = scmp.eq.s32.totalorder %s31, 0
      %p141 = por %p139, %p140
      %p142 = scmp.ne.s32.totalorder %s130, %s131
      %p143 = scmp.eq.s32.totalorder %s32, 1
      %p144 = por %p142, %p143
      %p146 = scmp.ne.s32.totalorder %s131, %s145
      %p147 = scmp.eq.s32.totalorder %s32, 0
      %p148 = por %p146, %p147
      %s150 = sadd.s32 %s149, 1
      %p153 = scmp.eq.s32.totalorder %s26, 1
      %p154 = scmp.ne.s32.totalorder %s149, %s151
      %p155 = scmp.eq.s32.totalorder %s26, 0
      %p156 = por %p154, %p155
      %p157 = scmp.ne.s32.totalorder %s149, %s151
      %p158 = scmp.eq.s32.totalorder %s31, 1
      %p159 = por %p157, %p158
      %p160 = scmp.ne.s32.totalorder %s151, %s152
      %p161 = scmp.eq.s32.totalorder %s31, 0
      %p162 = por %p160, %p161
      %p163 = scmp.ne.s32.totalorder %s151, %s152
      %p164 = scmp.eq.s32.totalorder %s32, 1
      %p165 = por %p163, %p164
      %p167 = scmp.ne.s32.totalorder %s152, %s166
      %p168 = scmp.eq.s32.totalorder %s32, 0
      %p169 = por %p167, %p168
      %s171 = sadd.s32 %s170, 1
      %p174 = scmp.eq.s32.totalorder %s26, 1
      %p175 = scmp.ne.s32.totalorder %s170, %s172
      %p176 = scmp.eq.s32.totalorder %s26, 0
      %p177 = por %p175, %p176
      %p178 = scmp.ne.s32.totalorder %s170, %s172
      %p179 = scmp.eq.s32.totalorder %s31, 1
      %p180 = por %p178, %p179
      %p181 = scmp.ne.s32.totalorder %s172, %s173
      %p182 = scmp.eq.s32.totalorder %s31, 0
      %p183 = por %p181, %p182
      %p184 = scmp.ne.s32.totalorder %s172, %s173
      %p185 = scmp.eq.s32.totalorder %s32, 1
      %p186 = por %p184, %p185
      %p188 = scmp.ne.s32.totalorder %s173, %s187
      %p189 = scmp.eq.s32.totalorder %s32, 0
      %p190 = por %p188, %p189
      %s192 = sadd.s32 %s191, 1
      %p195 = scmp.eq.s32.totalorder %s26, 1
      %p196 = scmp.ne.s32.totalorder %s191, %s193
      %p197 = scmp.eq.s32.totalorder %s26, 0
      %p198 = por %p196, %p197
      %p199 = scmp.ne.s32.totalorder %s191, %s193
      %p200 = scmp.eq.s32.totalorder %s31, 1
      %p201 = por %p199, %p200
      %p202 = scmp.ne.s32.totalorder %s193, %s194
      %p203 = scmp.eq.s32.totalorder %s31, 0
      %p204 = por %p202, %p203
      %p205 = scmp.ne.s32.totalorder %s193, %s194
      %p206 = scmp.eq.s32.totalorder %s32, 1
      %p207 = por %p205, %p206
      %p209 = scmp.ne.s32.totalorder %s194, %s208
      %p210 = scmp.eq.s32.totalorder %s32, 0
      %p211 = por %p209, %p210
      %s212 = ssub.s32 %s26, %s33
      %p213 = scmp.eq.s32.totalorder %s212, 0
      %s215 = sadd.s32 %s214, 1
      %s216 = scalar_select %p213, %s214, %s215
      %p219 = pneg %p213
      %p220 = scmp.eq.s32.totalorder %s26, 1
      %p221 = por %p219, %p220
      %p222 = scmp.ne.s32.totalorder %s214, %s217
      %p223 = scmp.eq.s32.totalorder %s26, 0
      %p224 = por %p222, %p223
      %p225 = scmp.ne.s32.totalorder %s214, %s217
      %p226 = scmp.eq.s32.totalorder %s31, 1
      %p227 = por %p225, %p226
      %p228 = scmp.ne.s32.totalorder %s217, %s218
      %p229 = scmp.eq.s32.totalorder %s31, 0
      %p230 = por %p228, %p229
      %p231 = scmp.ne.s32.totalorder %s217, %s218
      %p232 = scmp.eq.s32.totalorder %s32, 1
      %p233 = por %p231, %p232
      %p235 = scmp.ne.s32.totalorder %s218, %s234
      %p236 = scmp.eq.s32.totalorder %s32, 0
      %p237 = por %p235, %p236
      %s238 = ssub.s32 %s26, %s33
      %p239 = scmp.eq.s32.totalorder %s238, 0
      %s241 = sadd.s32 %s240, 1
      %s242 = scalar_select %p239, %s240, %s241
      %p245 = pneg %p239
      %p246 = scmp.eq.s32.totalorder %s26, 1
      %p247 = por %p245, %p246
      %p248 = scmp.ne.s32.totalorder %s240, %s243
      %p249 = scmp.eq.s32.totalorder %s26, 0
      %p250 = por %p248, %p249
      %p251 = scmp.ne.s32.totalorder %s240, %s243
      %p252 = scmp.eq.s32.totalorder %s31, 1
      %p253 = por %p251, %p252
      %p254 = scmp.ne.s32.totalorder %s243, %s244
      %p255 = scmp.eq.s32.totalorder %s31, 0
      %p256 = por %p254, %p255
      %p257 = scmp.ne.s32.totalorder %s243, %s244
      %p258 = scmp.eq.s32.totalorder %s32, 1
      %p259 = por %p257, %p258
      %p261 = scmp.ne.s32.totalorder %s244, %s260
      %p262 = scmp.eq.s32.totalorder %s32, 0
      %p263 = por %p261, %p262
      %s264 = ssub.s32 %s26, %s33
      %p265 = scmp.eq.s32.totalorder %s264, 0
      %s267 = sadd.s32 %s266, 1
      %s268 = scalar_select %p265, %s266, %s267
      %p271 = pneg %p265
      %p272 = scmp.eq.s32.totalorder %s26, 1
      %p273 = por %p271, %p272
      %p274 = scmp.ne.s32.totalorder %s266, %s269
      %p275 = scmp.eq.s32.totalorder %s26, 0
      %p276 = por %p274, %p275
      %p277 = scmp.ne.s32.totalorder %s266, %s269
      %p278 = scmp.eq.s32.totalorder %s31, 1
      %p279 = por %p277, %p278
      %p280 = scmp.ne.s32.totalorder %s269, %s270
      %p281 = scmp.eq.s32.totalorder %s31, 0
      %p282 = por %p280, %p281
      %p283 = scmp.ne.s32.totalorder %s269, %s270
      %p284 = scmp.eq.s32.totalorder %s32, 1
      %p285 = por %p283, %p284
      %p287 = scmp.ne.s32.totalorder %s270, %s286
      %p288 = scmp.eq.s32.totalorder %s32, 0
      %p289 = por %p287, %p288
      %p290 = scmp.le.s32.totalorder 1, %s26
      %p291 = scmp.lt.s32.totalorder %s26, 3
      %p292 = pnand %p290, %p291
      %p293 = pneg %p292
      // Predicated region
      $region9: #{tpu_custom_call.1} parent=5 // pred_check
        _
      $region10: #{tpu_custom_call.1} parent=5 // pred_check_branch
        %295 = sbr.rel (%p292) target = $region12
      $region11: #{tpu_custom_call.1} parent=5 // pred_region
        %s296 = ssub.s32 %s26, 1
        // Predicated region
        $region13: #{tpu_custom_call.1} parent=11 // pred_check
          %p297 = pneg %p99
        $region14: #{tpu_custom_call.1} parent=11 // pred_check_branch
          %299 = sbr.rel (%p297) target = $region16
        $region15: #{tpu_custom_call.1} parent=11 // pred_region
          _
        $region16: #{tpu_custom_call.1} parent=11 // pred_fallthru
          _
        // Predicated region
        $region17: #{tpu_custom_call.1} parent=11 // pred_check
          %p300 = pneg %p120
        $region18: #{tpu_custom_call.1} parent=11 // pred_check_branch
          %302 = sbr.rel (%p300) target = $region20
        $region19: #{tpu_custom_call.1} parent=11 // pred_region
          _
        $region20: #{tpu_custom_call.1} parent=11 // pred_fallthru
          _
        // Predicated region
        $region21: #{tpu_custom_call.1} parent=11 // pred_check
          %p303 = pneg %p141
        $region22: #{tpu_custom_call.1} parent=11 // pred_check_branch
          %305 = sbr.rel (%p303) target = $region24
        $region23: #{tpu_custom_call.1} parent=11 // pred_region
          _
        $region24: #{tpu_custom_call.1} parent=11 // pred_fallthru
          _
        // Predicated region
        $region25: #{tpu_custom_call.1} parent=11 // pred_check
          %p306 = pneg %p162
        $region26: #{tpu_custom_call.1} parent=11 // pred_check_branch
          %308 = sbr.rel (%p306) target = $region28
        $region27: #{tpu_custom_call.1} parent=11 // pred_region
          _
        $region28: #{tpu_custom_call.1} parent=11 // pred_fallthru
          _
        // Predicated region
        $region29: #{tpu_custom_call.1} parent=11 // pred_check
          %p309 = pneg %p183
        $region30: #{tpu_custom_call.1} parent=11 // pred_check_branch
          %311 = sbr.rel (%p309) target = $region32
        $region31: #{tpu_custom_call.1} parent=11 // pred_region
          _
        $region32: #{tpu_custom_call.1} parent=11 // pred_fallthru
          _
        // Predicated region
        $region33: #{tpu_custom_call.1} parent=11 // pred_check
          %p312 = pneg %p204
        $region34: #{tpu_custom_call.1} parent=11 // pred_check_branch
          %314 = sbr.rel (%p312) target = $region36
        $region35: #{tpu_custom_call.1} parent=11 // pred_region
          _
        $region36: #{tpu_custom_call.1} parent=11 // pred_fallthru
          _
      $region12: #{tpu_custom_call.1} parent=5 // pred_fallthru
        _
      %p315 = scmp.lt.s32.totalorder %s26, 2
      // Predicated region
      $region37: #{tpu_custom_call.1} parent=5 // pred_check
        %p316 = pneg %p315
      $region38: #{tpu_custom_call.1} parent=5 // pred_check_branch
        %318 = sbr.rel (%p316) target = $region40
      $region39: #{tpu_custom_call.1} parent=5 // pred_region
        // Predicated region
        $region41: #{tpu_custom_call.1} parent=39 // pred_check
          %p319 = pneg %p46
        $region42: #{tpu_custom_call.1} parent=39 // pred_check_branch
          %321 = sbr.rel (%p319) target = $region44
        $region43: #{tpu_custom_call.1} parent=39 // pred_region
          %s322 = sand.u32 %s36, 1
          %s323 = scalar_lea.sflag [#allocation3], %s322
          %s324 = sand.u32 %s36, 1
          %s325 = smul.addr %s324, 32
          %s326 = scalar_lea.vmem [#allocation2], %s325
          %s327 = smul.u32 4, %s26
          %s329 = ssub.s32 512, 512
          %330 = vsyncadd %s323, %s329
          %s331 = smul.addr %s327, 128
          %s332 = scalar_lea.hbm %s0, %s331
          %s333 = sshll.u32 %s326, 4
          %s334 = int_to_ptr.vmem [resolvable:$true] %s333
          %339 = dma.hbm_to_vmem [thread:$0]  %s332, 512, %s334, %s323, 128, 128, 8
        $region44: #{tpu_custom_call.1} parent=39 // pred_fallthru
          _
        // Predicated region
        $region45: #{tpu_custom_call.1} parent=39 // pred_check
          %p340 = pneg %p72
        $region46: #{tpu_custom_call.1} parent=39 // pred_check_branch
          %342 = sbr.rel (%p340) target = $region48
        $region47: #{tpu_custom_call.1} parent=39 // pred_region
          %s343 = smul.u32 4, %s26
          %p344 = scmp.lt.s32.totalorder %s343, 7
          %s345 = scalar_select %p344, %s343, 7
          %s346 = smul.addr %s345, 8
          %s347 = scalar_lea.vmem %s1, %s346
          %s348 = smul.u32 4, %s26
        $region48: #{tpu_custom_call.1} parent=39 // pred_fallthru
          _
      $region40: #{tpu_custom_call.1} parent=5 // pred_fallthru
        _
      %p349 = scmp.le.s32.totalorder 1, %s26
      %p350 = scmp.lt.s32.totalorder %s26, 3
      %p351 = pnand %p349, %p350
      %p352 = pneg %p351
      // Predicated region
      $region49: #{tpu_custom_call.1} parent=5 // pred_check
        _
      $region50: #{tpu_custom_call.1} parent=5 // pred_check_branch
        %354 = sbr.rel (%p351) target = $region52
      $region51: #{tpu_custom_call.1} parent=5 // pred_region
        %s355 = ssub.s32 %s26, 1
        %s356 = sand.u32 %s39, 1
        %s357 = scalar_lea.sflag [#allocation3], %s356
        %s358 = sand.u32 %s39, 1
        %s359 = smul.addr %s358, 32
        %s360 = scalar_lea.vmem [#allocation2], %s359
        // Predicated region
        $region53: #{tpu_custom_call.1} parent=51 // pred_check
          %p361 = pneg %p52
        $region54: #{tpu_custom_call.1} parent=51 // pred_check_branch
          %363 = sbr.rel (%p361) target = $region56
        $region55: #{tpu_custom_call.1} parent=51 // pred_region
          %364 = dma.done %s357, 512
        $region56: #{tpu_custom_call.1} parent=51 // pred_fallthru
          _
        %s365 = sand.u32 %s39, 1
        %s366 = scalar_lea.sflag [#allocation3], %s365
        %s367 = sand.u32 %s39, 1
        %s368 = smul.addr %s367, 32
        %s369 = scalar_lea.vmem [#allocation2], %s368
        %p370 = pneg %p52
        %p371 = pneg %p49
        %s372 = smul.u32 4, %s31
        %p373 = scmp.lt.s32.totalorder %s372, 7
        %s374 = scalar_select %p373, %s372, 7
        %s375 = smul.addr %s374, 8
        %s376 = scalar_lea.vmem %s1, %s375
        %p377 = pneg %p78
        %p378 = pneg %p75
        %p379 = pneg %p99
        %p380 = pneg %p96
        %p381 = pneg %p120
        %p382 = pneg %p117
        %p383 = pneg %p141
        %p384 = pneg %p138
        %p385 = pneg %p162
        %p386 = pneg %p159
        %p387 = pneg %p183
        %p388 = pneg %p180
        %p389 = pneg %p204
        %p390 = pneg %p201
        %p391 = pneg %p230
        %p392 = pneg %p227
        %s393 = sand.u32 %s217, 1
        %s394 = scalar_lea.sflag [#allocation4], %s393
        %s395 = sand.u32 %s217, 1
        %s396 = smul.addr %s395, 32
        %s397 = scalar_lea.vmem [#allocation5], %s396
        %p398 = pneg %p256
        %p399 = pneg %p253
        %s400 = sand.u32 %s31, 1
        %s401 = scalar_lea.sflag [#allocation7], %s400
        %s402 = sand.u32 %s243, 1
        %s403 = smul.addr %s402, 32
        %s404 = scalar_lea.vmem [#allocation6], %s403
        %p405 = pneg %p282
        %p406 = pneg %p279
        %s407 = sand.u32 %s31, 1
        %s408 = scalar_lea.sflag [#allocation7], %s407
        %s409 = sand.u32 %s269, 1
        %s410 = smul.addr %s409, 32
        %s411 = scalar_lea.vmem [#allocation8], %s410
        %s412 = smul.u32 4, %s31
        %s413 = smul.u32 4, %s31
        %p414 = scmp.lt.s32.totalorder %s413, 7
        %s415 = scalar_select %p414, %s413, 7
        %s416 = smul.addr %s415, 8
        %s417 = scalar_lea.vmem %s1, %s416
        %s418 = smul.u32 4, %s31
        %s419 = smul.u32 4, %s31
        %s420 = smul.u32 4, %s31
        %s421 = smul.u32 4, %s31
        %v422 = vld [vmem:[%s360] sm:$0xff]
        %v423 = vld [vmem:[%s360 + $0x8] sm:$0xff]
        %v424 = vld [vmem:[%s360 + $0x10] sm:$0xff]
        %v425 = vld [vmem:[%s360 + $0x18] sm:$0xff]
        %v426 = vld [vmem:[%s417] sm:$0xff]
        %v427 = vld [vmem:[%s417 + $0x8] sm:$0xff]
        %v428 = vld [vmem:[%s417 + $0x10] sm:$0xff]
        %v429 = vld [vmem:[%s417 + $0x18] sm:$0xff]
        %v430 = vld [vmem:[%s2] sm:$0xff]
        %v431 = vld [vmem:[%s2 + $0x8] sm:$0xff]
        %v432 = vld [vmem:[%s2 + $0x10] sm:$0xff]
        %v433 = vld [vmem:[%s2 + $0x18] sm:$0xff]
        %v434 = vld [vmem:[%s2 + $0x20] sm:$0xff]
        %v435 = vld [vmem:[%s2 + $0x28] sm:$0xff]
        %v436 = vld [vmem:[%s2 + $0x30] sm:$0xff]
        %v437 = vld [vmem:[%s2 + $0x38] sm:$0xff]
        %v438 = vld [vmem:[%s2 + $0x40] sm:$0xff]
        %v439 = vld [vmem:[%s2 + $0x48] sm:$0xff]
        %v440 = vld [vmem:[%s2 + $0x50] sm:$0xff]
        %v441 = vld [vmem:[%s2 + $0x58] sm:$0xff]
        %v442 = vld [vmem:[%s2 + $0x60] sm:$0xff]
        %v443 = vld [vmem:[%s2 + $0x68] sm:$0xff]
        %v444 = vld [vmem:[%s2 + $0x70] sm:$0xff]
        %v445 = vld [vmem:[%s2 + $0x78] sm:$0xff]
        %v446 = vld [vmem:[%s2 + $0x80] sm:$0xff]
        %v447 = vld [vmem:[%s2 + $0x88] sm:$0xff]
        %v448 = vld [vmem:[%s2 + $0x90] sm:$0xff]
        %v449 = vld [vmem:[%s2 + $0x98] sm:$0xff]
        %v450 = vld [vmem:[%s2 + $0xa0] sm:$0xff]
        %v451 = vld [vmem:[%s2 + $0xa8] sm:$0xff]
        %v452 = vld [vmem:[%s2 + $0xb0] sm:$0xff]
        %v453 = vld [vmem:[%s2 + $0xb8] sm:$0xff]
        %v454 = vld [vmem:[%s2 + $0xc0] sm:$0xff]
        %v455 = vld [vmem:[%s2 + $0xc8] sm:$0xff]
        %v456 = vld [vmem:[%s2 + $0xd0] sm:$0xff]
        %v457 = vld [vmem:[%s2 + $0xd8] sm:$0xff]
        %v458 = vld [vmem:[%s2 + $0xe0] sm:$0xff]
        %v459 = vld [vmem:[%s2 + $0xe8] sm:$0xff]
        %v460 = vld [vmem:[%s2 + $0xf0] sm:$0xff]
        %v461 = vld [vmem:[%s2 + $0xf8] sm:$0xff]
        %v462 = vld [vmem:[%s3] sm:$0x3]
        %v464 = vlaneseq
        %v465 = vshrl.u32 %v464, 7
        %v466 = vsub.s32 0, %v465
        %v467 = vrot.slane %v462, %v466
        %v468 = vlaneseq
        %v469 = vshrl.u32 %v468, 7
        %v470 = vsub.s32 1, %v469
        %v471 = vrot.slane %v462, %v470
        %474 = vmatprep.subr.mxu0 %v431
        %475 = vmatpush1.msra.mxu0 %v430
        %476 = vmatprep.subr.mxu0 %v433
        %477 = vmatpush1.msra.mxu0 %v432
        %478 = vmatprep.subr.mxu0 %v435
        %479 = vmatpush1.msra.mxu0 %v434
        %480 = vmatprep.subr.mxu0 %v437
        %481 = vmatpush1.msra.mxu0 %v436
        %482 = vmatprep.subr.mxu0 %v439
        %483 = vmatpush1.msra.mxu0 %v438
        %484 = vmatprep.subr.mxu0 %v441
        %485 = vmatpush1.msra.mxu0 %v440
        %486 = vmatprep.subr.mxu0 %v443
        %487 = vmatpush1.msra.mxu0 %v442
        %488 = vmatprep.subr.mxu0 %v445
        %489 = vmatpush1.msra.mxu0 %v444
        %490 = vmatprep.subr.mxu0 %v447
        %491 = vmatpush1.msra.mxu0 %v446
        %492 = vmatprep.subr.mxu0 %v449
        %493 = vmatpush1.msra.mxu0 %v448
        %494 = vmatprep.subr.mxu0 %v451
        %495 = vmatpush1.msra.mxu0 %v450
        %496 = vmatprep.subr.mxu0 %v453
        %497 = vmatpush1.msra.mxu0 %v452
        %498 = vmatprep.subr.mxu0 %v455
        %499 = vmatpush1.msra.mxu0 %v454
        %500 = vmatprep.subr.mxu0 %v457
        %501 = vmatpush1.msra.mxu0 %v456
        %502 = vmatprep.subr.mxu0 %v459
        %503 = vmatpush1.msra.mxu0 %v458
        %504 = vmatprep.subr.mxu0 %v461
        %505 = vmatpush1.msra.mxu0 %v460
        %506 = vmatprep.subr.mxu0 0.0
        %507 = vmatpush1.msra.mxu0 0.0
        %508 = vmatprep.subr.mxu0 0.0
        %509 = vmatpush1.msra.mxu0 0.0
        %510 = vmatprep.subr.mxu0 0.0
        %511 = vmatpush1.msra.mxu0 0.0
        %512 = vmatprep.subr.mxu0 0.0
        %513 = vmatpush1.msra.mxu0 0.0
        %514 = vmatprep.subr.mxu0 0.0
        %515 = vmatpush1.msra.mxu0 0.0
        %516 = vmatprep.subr.mxu0 0.0
        %517 = vmatpush1.msra.mxu0 0.0
        %518 = vmatprep.subr.mxu0 0.0
        %519 = vmatpush1.msra.mxu0 0.0
        %520 = vmatprep.subr.mxu0 0.0
        %521 = vmatpush1.msra.mxu0 0.0
        %522 = vmatprep.subr.mxu0 0.0
        %523 = vmatpush1.msra.mxu0 0.0
        %524 = vmatprep.subr.mxu0 0.0
        %525 = vmatpush1.msra.mxu0 0.0
        %526 = vmatprep.subr.mxu0 0.0
        %527 = vmatpush1.msra.mxu0 0.0
        %528 = vmatprep.subr.mxu0 0.0
        %529 = vmatpush1.msra.mxu0 0.0
        %530 = vmatprep.subr.mxu0 0.0
        %531 = vmatpush1.msra.mxu0 0.0
        %532 = vmatprep.subr.mxu0 0.0
        %533 = vmatpush1.msra.mxu0 0.0
        %534 = vmatprep.subr.mxu0 0.0
        %535 = vmatpush1.msra.mxu0 0.0
        %536 = vmatprep.subr.mxu0 0.0
        %537 = vmatpush1.msra.mxu0 0.0
        %538 = vmatprep.mubr.f32.mxu0 0.0
        %539 = vmatmul.mubr.f32.gmra.mrb[0].mxu0 %v422
        %v540 = vpop.f32.mrb[0].mxu0
        %v541 = vadd.f32 %v467, %v540
        %v542 = vpop.f32.mrb[0].mxu0
        %v543 = vadd.f32 %v471, %v542
        %544 = vmatprep.mubr.f32.mxu0 0.0
        %545 = vmatmul.mubr.f32.gmra.mrb[0].mxu0 %v423
        %v546 = vpop.f32.mrb[0].mxu0
        %v547 = vadd.f32 %v467, %v546
        %v548 = vpop.f32.mrb[0].mxu0
        %v549 = vadd.f32 %v471, %v548
        %550 = vmatprep.mubr.f32.mxu0 0.0
        %551 = vmatmul.mubr.f32.gmra.mrb[0].mxu0 %v424
        %v552 = vpop.f32.mrb[0].mxu0
        %v553 = vadd.f32 %v467, %v552
        %v554 = vpop.f32.mrb[0].mxu0
        %v555 = vadd.f32 %v471, %v554
        %556 = vmatprep.mubr.f32.mxu0 0.0
        %557 = vmatmul.mubr.f32.gmra.mrb[0].mxu0 %v425
        %v558 = vpop.f32.mrb[0].mxu0
        %v559 = vadd.f32 %v467, %v558
        %v560 = vpop.f32.mrb[0].mxu0
        %v561 = vadd.f32 %v471, %v560
        %562 = vdwg.mxu0
        %v563 = vxor.u32 %v541, 2147483648
        %v564 = vxor.u32 %v547, 2147483648
        %v565 = vxor.u32 %v553, 2147483648
        %v566 = vxor.u32 %v559, 2147483648
        %v567 = vmul.f32 %v563, 1.442695
        %v568 = vpow.pop %v567
        %v569 = vmul.f32 %v564, 1.442695
        %v570 = vpow.pop %v569
        %v571 = vmul.f32 %v565, 1.442695
        %v572 = vpow.pop %v571
        %v573 = vmul.f32 %v566, 1.442695
        %v574 = vpow.pop %v573
        %v575 = vadd.f32 %v568, 1.0
        %v576 = vadd.f32 %v570, 1.0
        %v577 = vadd.f32 %v572, 1.0
        %v578 = vadd.f32 %v574, 1.0
        %v579 = vrcp.pop %v575
        %v580 = vmul.f32 1.0, %v579
        %v581 = vrcp.pop %v576
        %v582 = vmul.f32 1.0, %v581
        %v583 = vrcp.pop %v577
        %v584 = vmul.f32 1.0, %v583
        %v585 = vrcp.pop %v578
        %v586 = vmul.f32 1.0, %v585
        %v587 = vmul.f32 %v541, %v580
        %v588 = vmul.f32 %v547, %v582
        %v589 = vmul.f32 %v553, %v584
        %v590 = vmul.f32 %v559, %v586
        %v591 = vxor.u32 %v543, 2147483648
        %v592 = vxor.u32 %v549, 2147483648
        %v593 = vxor.u32 %v555, 2147483648
        %v594 = vxor.u32 %v561, 2147483648
        %v595 = vmul.f32 %v591, 1.442695
        %v596 = vpow.pop %v595
        %v597 = vmul.f32 %v592, 1.442695
        %v598 = vpow.pop %v597
        %v599 = vmul.f32 %v593, 1.442695
        %v600 = vpow.pop %v599
        %v601 = vmul.f32 %v594, 1.442695
        %v602 = vpow.pop %v601
        %v603 = vadd.f32 %v596, 1.0
        %v604 = vadd.f32 %v598, 1.0
        %v605 = vadd.f32 %v600, 1.0
        %v606 = vadd.f32 %v602, 1.0
        %v607 = vrcp.pop %v603
        %v608 = vmul.f32 1.0, %v607
        %v609 = vrcp.pop %v604
        %v610 = vmul.f32 1.0, %v609
        %v611 = vrcp.pop %v605
        %v612 = vmul.f32 1.0, %v611
        %v613 = vrcp.pop %v606
        %v614 = vmul.f32 1.0, %v613
        %v615 = vmul.f32 %v543, %v608
        %v616 = vmul.f32 %v549, %v610
        %v617 = vmul.f32 %v555, %v612
        %v618 = vmul.f32 %v561, %v614
        %v619 = vld [vmem:[%s4] sm:$0xff]
        %vm620 = vcmask 64512
        %v622 = vsel %vm620, %v426, 0
        %v625 = vsel %vm620, %v427, 0
        %v628 = vsel %vm620, %v428, 0
        %v631 = vsel %vm620, %v429, 0
        %633 = vmatprep.subr.mxu0 0.0
        %634 = vmatpush1.msra.mxu0 %v619
        %635 = vmatprep.subr.mxu0 0.0
        %636 = vmatpush1.msra.mxu0 0.0
        %637 = vmatprep.subr.mxu0 0.0
        %638 = vmatpush1.msra.mxu0 0.0
        %639 = vmatprep.subr.mxu0 0.0
        %640 = vmatpush1.msra.mxu0 0.0
        %641 = vmatprep.subr.mxu0 0.0
        %642 = vmatpush1.msra.mxu0 0.0
        %643 = vmatprep.subr.mxu0 0.0
        %644 = vmatpush1.msra.mxu0 0.0
        %645 = vmatprep.subr.mxu0 0.0
        %646 = vmatpush1.msra.mxu0 0.0
        %647 = vmatprep.subr.mxu0 0.0
        %648 = vmatpush1.msra.mxu0 0.0
        %649 = vmatprep.subr.mxu0 0.0
        %650 = vmatpush1.msra.mxu0 0.0
        %651 = vmatprep.subr.mxu0 0.0
        %652 = vmatpush1.msra.mxu0 0.0
        %653 = vmatprep.subr.mxu0 0.0
        %654 = vmatpush1.msra.mxu0 0.0
        %655 = vmatprep.subr.mxu0 0.0
        %656 = vmatpush1.msra.mxu0 0.0
        %657 = vmatprep.subr.mxu0 0.0
        %658 = vmatpush1.msra.mxu0 0.0
        %659 = vmatprep.subr.mxu0 0.0
        %660 = vmatpush1.msra.mxu0 0.0
        %661 = vmatprep.subr.mxu0 0.0
        %662 = vmatpush1.msra.mxu0 0.0
        %663 = vmatprep.subr.mxu0 0.0
        %664 = vmatpush1.msra.mxu0 0.0
        %665 = vmatprep.subr.mxu0 0.0
        %666 = vmatpush1.msra.mxu0 0.0
        %667 = vmatprep.subr.mxu0 0.0
        %668 = vmatpush1.msra.mxu0 0.0
        %669 = vmatprep.subr.mxu0 0.0
        %670 = vmatpush1.msra.mxu0 0.0
        %671 = vmatprep.subr.mxu0 0.0
        %672 = vmatpush1.msra.mxu0 0.0
        %673 = vmatprep.subr.mxu0 0.0
        %674 = vmatpush1.msra.mxu0 0.0
        %675 = vmatprep.subr.mxu0 0.0
        %676 = vmatpush1.msra.mxu0 0.0
        %677 = vmatprep.subr.mxu0 0.0
        %678 = vmatpush1.msra.mxu0 0.0
        %679 = vmatprep.subr.mxu0 0.0
        %680 = vmatpush1.msra.mxu0 0.0
        %681 = vmatprep.subr.mxu0 0.0
        %682 = vmatpush1.msra.mxu0 0.0
        %683 = vmatprep.subr.mxu0 0.0
        %684 = vmatpush1.msra.mxu0 0.0
        %685 = vmatprep.subr.mxu0 0.0
        %686 = vmatpush1.msra.mxu0 0.0
        %687 = vmatprep.subr.mxu0 0.0
        %688 = vmatpush1.msra.mxu0 0.0
        %689 = vmatprep.subr.mxu0 0.0
        %690 = vmatpush1.msra.mxu0 0.0
        %691 = vmatprep.subr.mxu0 0.0
        %692 = vmatpush1.msra.mxu0 0.0
        %693 = vmatprep.subr.mxu0 0.0
        %694 = vmatpush1.msra.mxu0 0.0
        %695 = vmatprep.subr.mxu0 0.0
        %696 = vmatpush1.msra.mxu0 0.0
        %697 = vmatprep.mubr.f32.mxu0 0.0
        %698 = vmatmul.mubr.f32.gmra.mrb[0].mxu0 %v622
        %v699 = vpop.f32.mrb[0].mxu0
        %v700 = vadd.f32 0.0, %v699
        %v701 = vpop.f32.mrb[0].mxu0
        %702 = vmatprep.mubr.f32.mxu0 0.0
        %703 = vmatmul.mubr.f32.gmra.mrb[0].mxu0 %v625
        %v704 = vpop.f32.mrb[0].mxu0
        %v705 = vadd.f32 0.0, %v704
        %v706 = vpop.f32.mrb[0].mxu0
        %707 = vmatprep.mubr.f32.mxu0 0.0
        %708 = vmatmul.mubr.f32.gmra.mrb[0].mxu0 %v628
        %v709 = vpop.f32.mrb[0].mxu0
        %v710 = vadd.f32 0.0, %v709
        %v711 = vpop.f32.mrb[0].mxu0
        %712 = vmatprep.mubr.f32.mxu0 0.0
        %713 = vmatmul.mubr.f32.gmra.mrb[0].mxu0 %v631
        %v714 = vpop.f32.mrb[0].mxu0
        %v715 = vadd.f32 0.0, %v714
        %v716 = vpop.f32.mrb[0].mxu0
        %717 = vdwg.mxu0
        %v718 = vld [vmem:[%s5] sm:$0xff]
        %v720 = vsel %vm620, %v700, 0
        %v723 = vsel %vm620, %v705, 0
        %v726 = vsel %vm620, %v710, 0
        %v729 = vsel %vm620, %v715, 0
        %731 = vmatprep.subr.mxu0 0.0
        %732 = vmatpush1.msra.mxu0 %v718
        %733 = vmatprep.subr.mxu0 0.0
        %734 = vmatpush1.msra.mxu0 0.0
        %735 = vmatprep.subr.mxu0 0.0
        %736 = vmatpush1.msra.mxu0 0.0
        %737 = vmatprep.subr.mxu0 0.0
        %738 = vmatpush1.msra.mxu0 0.0
        %739 = vmatprep.subr.mxu0 0.0
        %740 = vmatpush1.msra.mxu0 0.0
        %741 = vmatprep.subr.mxu0 0.0
        %742 = vmatpush1.msra.mxu0 0.0
        %743 = vmatprep.subr.mxu0 0.0
        %744 = vmatpush1.msra.mxu0 0.0
        %745 = vmatprep.subr.mxu0 0.0
        %746 = vmatpush1.msra.mxu0 0.0
        %747 = vmatprep.subr.mxu0 0.0
        %748 = vmatpush1.msra.mxu0 0.0
        %749 = vmatprep.subr.mxu0 0.0
        %750 = vmatpush1.msra.mxu0 0.0
        %751 = vmatprep.subr.mxu0 0.0
        %752 = vmatpush1.msra.mxu0 0.0
        %753 = vmatprep.subr.mxu0 0.0
        %754 = vmatpush1.msra.mxu0 0.0
        %755 = vmatprep.subr.mxu0 0.0
        %756 = vmatpush1.msra.mxu0 0.0
        %757 = vmatprep.subr.mxu0 0.0
        %758 = vmatpush1.msra.mxu0 0.0
        %759 = vmatprep.subr.mxu0 0.0
        %760 = vmatpush1.msra.mxu0 0.0
        %761 = vmatprep.subr.mxu0 0.0
        %762 = vmatpush1.msra.mxu0 0.0
        %763 = vmatprep.subr.mxu0 0.0
        %764 = vmatpush1.msra.mxu0 0.0
        %765 = vmatprep.subr.mxu0 0.0
        %766 = vmatpush1.msra.mxu0 0.0
        %767 = vmatprep.subr.mxu0 0.0
        %768 = vmatpush1.msra.mxu0 0.0
        %769 = vmatprep.subr.mxu0 0.0
        %770 = vmatpush1.msra.mxu0 0.0
        %771 = vmatprep.subr.mxu0 0.0
        %772 = vmatpush1.msra.mxu0 0.0
        %773 = vmatprep.subr.mxu0 0.0
        %774 = vmatpush1.msra.mxu0 0.0
        %775 = vmatprep.subr.mxu0 0.0
        %776 = vmatpush1.msra.mxu0 0.0
        %777 = vmatprep.subr.mxu0 0.0
        %778 = vmatpush1.msra.mxu0 0.0
        %779 = vmatprep.subr.mxu0 0.0
        %780 = vmatpush1.msra.mxu0 0.0
        %781 = vmatprep.subr.mxu0 0.0
        %782 = vmatpush1.msra.mxu0 0.0
        %783 = vmatprep.subr.mxu0 0.0
        %784 = vmatpush1.msra.mxu0 0.0
        %785 = vmatprep.subr.mxu0 0.0
        %786 = vmatpush1.msra.mxu0 0.0
        %787 = vmatprep.subr.mxu0 0.0
        %788 = vmatpush1.msra.mxu0 0.0
        %789 = vmatprep.subr.mxu0 0.0
        %790 = vmatpush1.msra.mxu0 0.0
        %791 = vmatprep.subr.mxu0 0.0
        %792 = vmatpush1.msra.mxu0 0.0
        %793 = vmatprep.subr.mxu0 0.0
        %794 = vmatpush1.msra.mxu0 0.0
        %795 = vmatprep.mubr.f32.mxu0 0.0
        %796 = vmatmul.mubr.f32.gmra.mrb[0].mxu0 %v720
        %v797 = vpop.f32.mrb[0].mxu0
        %v798 = vadd.f32 0.0, %v797
        %v799 = vpop.f32.mrb[0].mxu0
        %800 = vmatprep.mubr.f32.mxu0 0.0
        %801 = vmatmul.mubr.f32.gmra.mrb[0].mxu0 %v723
        %v802 = vpop.f32.mrb[0].mxu0
        %v803 = vadd.f32 0.0, %v802
        %v804 = vpop.f32.mrb[0].mxu0
        %805 = vmatprep.mubr.f32.mxu0 0.0
        %806 = vmatmul.mubr.f32.gmra.mrb[0].mxu0 %v726
        %v807 = vpop.f32.mrb[0].mxu0
        %v808 = vadd.f32 0.0, %v807
        %v809 = vpop.f32.mrb[0].mxu0
        %810 = vmatprep.mubr.f32.mxu0 0.0
        %811 = vmatmul.mubr.f32.gmra.mrb[0].mxu0 %v729
        %v812 = vpop.f32.mrb[0].mxu0
        %v813 = vadd.f32 0.0, %v812
        %v814 = vpop.f32.mrb[0].mxu0
        %815 = vdwg.mxu0
        %v816 = vmul.f32 %v615, %v798
        %v817 = vmul.f32 %v616, %v803
        %v818 = vmul.f32 %v617, %v808
        %v819 = vmul.f32 %v618, %v813
        %v820 = vld [vmem:[%s6] sm:$0xff]
        %v821 = vld [vmem:[%s6 + $0x8] sm:$0xff]
        %v822 = vld [vmem:[%s6 + $0x10] sm:$0xff]
        %v823 = vld [vmem:[%s6 + $0x18] sm:$0xff]
        %v824 = vld [vmem:[%s6 + $0x20] sm:$0xff]
        %v825 = vld [vmem:[%s6 + $0x28] sm:$0xff]
        %v826 = vld [vmem:[%s6 + $0x30] sm:$0xff]
        %v827 = vld [vmem:[%s6 + $0x38] sm:$0xff]
        %v828 = vld [vmem:[%s6 + $0x40] sm:$0xff]
        %v829 = vld [vmem:[%s6 + $0x48] sm:$0xff]
        %v830 = vld [vmem:[%s6 + $0x50] sm:$0xff]
        %v831 = vld [vmem:[%s6 + $0x58] sm:$0xff]
        %v832 = vld [vmem:[%s6 + $0x60] sm:$0xff]
        %v833 = vld [vmem:[%s6 + $0x68] sm:$0xff]
        %v834 = vld [vmem:[%s6 + $0x70] sm:$0xff]
        %v835 = vld [vmem:[%s6 + $0x78] sm:$0xff]
        %836 = vmatprep.subr.mxu0 0.0
        %837 = vmatpush1.msra.mxu0 %v820
        %838 = vmatprep.subr.mxu0 0.0
        %839 = vmatpush1.msra.mxu0 %v821
        %840 = vmatprep.subr.mxu0 0.0
        %841 = vmatpush1.msra.mxu0 %v822
        %842 = vmatprep.subr.mxu0 0.0
        %843 = vmatpush1.msra.mxu0 %v823
        %844 = vmatprep.subr.mxu0 0.0
        %845 = vmatpush1.msra.mxu0 %v824
        %846 = vmatprep.subr.mxu0 0.0
        %847 = vmatpush1.msra.mxu0 %v825
        %848 = vmatprep.subr.mxu0 0.0
        %849 = vmatpush1.msra.mxu0 %v826
        %850 = vmatprep.subr.mxu0 0.0
        %851 = vmatpush1.msra.mxu0 %v827
        %852 = vmatprep.subr.mxu0 0.0
        %853 = vmatpush1.msra.mxu0 %v828
        %854 = vmatprep.subr.mxu0 0.0
        %855 = vmatpush1.msra.mxu0 %v829
        %856 = vmatprep.subr.mxu0 0.0
        %857 = vmatpush1.msra.mxu0 %v830
        %858 = vmatprep.subr.mxu0 0.0
        %859 = vmatpush1.msra.mxu0 %v831
        %860 = vmatprep.subr.mxu0 0.0
        %861 = vmatpush1.msra.mxu0 %v832
        %862 = vmatprep.subr.mxu0 0.0
        %863 = vmatpush1.msra.mxu0 %v833
        %864 = vmatprep.subr.mxu0 0.0
        %865 = vmatpush1.msra.mxu0 %v834
        %866 = vmatprep.subr.mxu0 0.0
        %867 = vmatpush1.msra.mxu0 %v835
        %868 = vmatprep.subr.mxu0 0.0
        %869 = vmatpush1.msra.mxu0 0.0
        %870 = vmatprep.subr.mxu0 0.0
        %871 = vmatpush1.msra.mxu0 0.0
        %872 = vmatprep.subr.mxu0 0.0
        %873 = vmatpush1.msra.mxu0 0.0
        %874 = vmatprep.subr.mxu0 0.0
        %875 = vmatpush1.msra.mxu0 0.0
        %876 = vmatprep.subr.mxu0 0.0
        %877 = vmatpush1.msra.mxu0 0.0
        %878 = vmatprep.subr.mxu0 0.0
        %879 = vmatpush1.msra.mxu0 0.0
        %880 = vmatprep.subr.mxu0 0.0
        %881 = vmatpush1.msra.mxu0 0.0
        %882 = vmatprep.subr.mxu0 0.0
        %883 = vmatpush1.msra.mxu0 0.0
        %884 = vmatprep.subr.mxu0 0.0
        %885 = vmatpush1.msra.mxu0 0.0
        %886 = vmatprep.subr.mxu0 0.0
        %887 = vmatpush1.msra.mxu0 0.0
        %888 = vmatprep.subr.mxu0 0.0
        %889 = vmatpush1.msra.mxu0 0.0
        %890 = vmatprep.subr.mxu0 0.0
        %891 = vmatpush1.msra.mxu0 0.0
        %892 = vmatprep.subr.mxu0 0.0
        %893 = vmatpush1.msra.mxu0 0.0
        %894 = vmatprep.subr.mxu0 0.0
        %895 = vmatpush1.msra.mxu0 0.0
        %896 = vmatprep.subr.mxu0 0.0
        %897 = vmatpush1.msra.mxu0 0.0
        %898 = vmatprep.subr.mxu0 0.0
        %899 = vmatpush1.msra.mxu0 0.0
        %900 = vmatprep.mubr.f32.mxu0 0.0
        %901 = vmatmul.mubr.f32.gmra.mrb[0].mxu0 %v816
        %v902 = vpop.f32.mrb[0].mxu0
        %v903 = vadd.f32 0.0, %v902
        %v904 = vpop.f32.mrb[0].mxu0
        %905 = vmatprep.mubr.f32.mxu0 0.0
        %906 = vmatmul.mubr.f32.gmra.mrb[0].mxu0 %v817
        %v907 = vpop.f32.mrb[0].mxu0
        %v908 = vadd.f32 0.0, %v907
        %v909 = vpop.f32.mrb[0].mxu0
        %910 = vmatprep.mubr.f32.mxu0 0.0
        %911 = vmatmul.mubr.f32.gmra.mrb[0].mxu0 %v818
        %v912 = vpop.f32.mrb[0].mxu0
        %v913 = vadd.f32 0.0, %v912
        %v914 = vpop.f32.mrb[0].mxu0
        %915 = vmatprep.mubr.f32.mxu0 0.0
        %916 = vmatmul.mubr.f32.gmra.mrb[0].mxu0 %v819
        %v917 = vpop.f32.mrb[0].mxu0
        %v918 = vadd.f32 0.0, %v917
        %v919 = vpop.f32.mrb[0].mxu0
        %920 = vdwg.mxu0
        %v921 = vxor.u32 %v903, 2147483648
        %v922 = vxor.u32 %v908, 2147483648
        %v923 = vxor.u32 %v913, 2147483648
        %v924 = vxor.u32 %v918, 2147483648
        %v925 = vmul.f32 %v921, 1.442695
        %v926 = vpow.pop %v925
        %v927 = vmul.f32 %v922, 1.442695
        %v928 = vpow.pop %v927
        %v929 = vmul.f32 %v923, 1.442695
        %v930 = vpow.pop %v929
        %v931 = vmul.f32 %v924, 1.442695
        %v932 = vpow.pop %v931
        %v933 = vadd.f32 %v926, 1.0
        %v934 = vadd.f32 %v928, 1.0
        %v935 = vadd.f32 %v930, 1.0
        %v936 = vadd.f32 %v932, 1.0
        %v937 = vrcp.pop %v933
        %v938 = vmul.f32 1.0, %v937
        %v939 = vrcp.pop %v934
        %v940 = vmul.f32 1.0, %v939
        %v941 = vrcp.pop %v935
        %v942 = vmul.f32 1.0, %v941
        %v943 = vrcp.pop %v936
        %v944 = vmul.f32 1.0, %v943
        %v945 = vmul.f32 %v903, %v938
        %v946 = vmul.f32 %v908, %v940
        %v947 = vmul.f32 %v913, %v942
        %v948 = vmul.f32 %v918, %v944
        %v949 = vld [vmem:[%s7] sm:$0xff]
        %950 = vmatprep.subr.mxu0 0.0
        %951 = vmatpush1.msra.mxu0 %v949
        %952 = vmatprep.subr.mxu0 0.0
        %953 = vmatpush1.msra.mxu0 0.0
        %954 = vmatprep.subr.mxu0 0.0
        %955 = vmatpush1.msra.mxu0 0.0
        %956 = vmatprep.subr.mxu0 0.0
        %957 = vmatpush1.msra.mxu0 0.0
        %958 = vmatprep.subr.mxu0 0.0
        %959 = vmatpush1.msra.mxu0 0.0
        %960 = vmatprep.subr.mxu0 0.0
        %961 = vmatpush1.msra.mxu0 0.0
        %962 = vmatprep.subr.mxu0 0.0
        %963 = vmatpush1.msra.mxu0 0.0
        %964 = vmatprep.subr.mxu0 0.0
        %965 = vmatpush1.msra.mxu0 0.0
        %966 = vmatprep.subr.mxu0 0.0
        %967 = vmatpush1.msra.mxu0 0.0
        %968 = vmatprep.subr.mxu0 0.0
        %969 = vmatpush1.msra.mxu0 0.0
        %970 = vmatprep.subr.mxu0 0.0
        %971 = vmatpush1.msra.mxu0 0.0
        %972 = vmatprep.subr.mxu0 0.0
        %973 = vmatpush1.msra.mxu0 0.0
        %974 = vmatprep.subr.mxu0 0.0
        %975 = vmatpush1.msra.mxu0 0.0
        %976 = vmatprep.subr.mxu0 0.0
        %977 = vmatpush1.msra.mxu0 0.0
        %978 = vmatprep.subr.mxu0 0.0
        %979 = vmatpush1.msra.mxu0 0.0
        %980 = vmatprep.subr.mxu0 0.0
        %981 = vmatpush1.msra.mxu0 0.0
        %982 = vmatprep.subr.mxu0 0.0
        %983 = vmatpush1.msra.mxu0 0.0
        %984 = vmatprep.subr.mxu0 0.0
        %985 = vmatpush1.msra.mxu0 0.0
        %986 = vmatprep.subr.mxu0 0.0
        %987 = vmatpush1.msra.mxu0 0.0
        %988 = vmatprep.subr.mxu0 0.0
        %989 = vmatpush1.msra.mxu0 0.0
        %990 = vmatprep.subr.mxu0 0.0
        %991 = vmatpush1.msra.mxu0 0.0
        %992 = vmatprep.subr.mxu0 0.0
        %993 = vmatpush1.msra.mxu0 0.0
        %994 = vmatprep.subr.mxu0 0.0
        %995 = vmatpush1.msra.mxu0 0.0
        %996 = vmatprep.subr.mxu0 0.0
        %997 = vmatpush1.msra.mxu0 0.0
        %998 = vmatprep.subr.mxu0 0.0
        %999 = vmatpush1.msra.mxu0 0.0
        %1000 = vmatprep.subr.mxu0 0.0
        %1001 = vmatpush1.msra.mxu0 0.0
        %1002 = vmatprep.subr.mxu0 0.0
        %1003 = vmatpush1.msra.mxu0 0.0
        %1004 = vmatprep.subr.mxu0 0.0
        %1005 = vmatpush1.msra.mxu0 0.0
        %1006 = vmatprep.subr.mxu0 0.0
        %1007 = vmatpush1.msra.mxu0 0.0
        %1008 = vmatprep.subr.mxu0 0.0
        %1009 = vmatpush1.msra.mxu0 0.0
        %1010 = vmatprep.subr.mxu0 0.0
        %1011 = vmatpush1.msra.mxu0 0.0
        %1012 = vmatprep.subr.mxu0 0.0
        %1013 = vmatpush1.msra.mxu0 0.0
        %1014 = vmatprep.mubr.f32.mxu0 0.0
        %1015 = vmatmul.mubr.f32.gmra.mrb[0].mxu0 %v622
        %v1016 = vpop.f32.mrb[0].mxu0
        %v1017 = vadd.f32 0.0, %v1016
        %v1018 = vpop.f32.mrb[0].mxu0
        %1019 = vmatprep.mubr.f32.mxu0 0.0
        %1020 = vmatmul.mubr.f32.gmra.mrb[0].mxu0 %v625
        %v1021 = vpop.f32.mrb[0].mxu0
        %v1022 = vadd.f32 0.0, %v1021
        %v1023 = vpop.f32.mrb[0].mxu0
        %1024 = vmatprep.mubr.f32.mxu0 0.0
        %1025 = vmatmul.mubr.f32.gmra.mrb[0].mxu0 %v628
        %v1026 = vpop.f32.mrb[0].mxu0
        %v1027 = vadd.f32 0.0, %v1026
        %v1028 = vpop.f32.mrb[0].mxu0
        %1029 = vmatprep.mubr.f32.mxu0 0.0
        %1030 = vmatmul.mubr.f32.gmra.mrb[0].mxu0 %v631
        %v1031 = vpop.f32.mrb[0].mxu0
        %v1032 = vadd.f32 0.0, %v1031
        %v1033 = vpop.f32.mrb[0].mxu0
        %1034 = vdwg.mxu0
        %1035 = vst [vmem:[%s397] sm:$0xff] %v587
        %1036 = vst [vmem:[%s397 + $0x8] sm:$0xff] %v588
        %1037 = vst [vmem:[%s397 + $0x10] sm:$0xff] %v589
        %1038 = vst [vmem:[%s397 + $0x18] sm:$0xff] %v590
        %vm1039 = vcmask 523264
        %1040 = vst.msk [vmem:[%s404] sm:$0xff] %vm1039, %v945
        %1041 = vst.msk [vmem:[%s404 + $0x8] sm:$0xff] %vm1039, %v946
        %1042 = vst.msk [vmem:[%s404 + $0x10] sm:$0xff] %vm1039, %v947
        %1043 = vst.msk [vmem:[%s404 + $0x18] sm:$0xff] %vm1039, %v948
        %1044 = vst [vmem:[%s411] sm:$0xff] %v1017
        %1045 = vst [vmem:[%s411 + $0x8] sm:$0xff] %v1022
        %1046 = vst [vmem:[%s411 + $0x10] sm:$0xff] %v1027
        %1047 = vst [vmem:[%s411 + $0x18] sm:$0xff] %v1032
        %s1048 = sand.u32 %s217, 1
        %s1049 = scalar_lea.sflag [#allocation4], %s1048
        %s1050 = sand.u32 %s217, 1
        %s1051 = smul.addr %s1050, 32
        %s1052 = scalar_lea.vmem [#allocation5], %s1051
        %s1053 = sand.u32 %s31, 1
        %s1054 = scalar_lea.sflag [#allocation7], %s1053
        %s1055 = sand.u32 %s243, 1
        %s1056 = smul.addr %s1055, 32
        %s1057 = scalar_lea.vmem [#allocation6], %s1056
        %s1058 = sand.u32 %s31, 1
        %s1059 = scalar_lea.sflag [#allocation7], %s1058
        %s1060 = sand.u32 %s269, 1
        %s1061 = smul.addr %s1060, 32
        %s1062 = scalar_lea.vmem [#allocation8], %s1061
        // Predicated region
        $region57: #{tpu_custom_call.1} parent=51 // pred_check
          %p1063 = pneg %p227
        $region58: #{tpu_custom_call.1} parent=51 // pred_check_branch
          %1065 = sbr.rel (%p1063) target = $region60
        $region59: #{tpu_custom_call.1} parent=51 // pred_region
          %s1066 = smul.u32 4, %s31
          %s1068 = ssub.s32 512, 512
          %1069 = vsyncadd %s1049, %s1068
          %s1070 = smul.addr %s1066, 128
          %s1071 = scalar_lea.hbm %s8, %s1070
          %s1072 = sshll.u32 %s1052, 4
          %s1073 = int_to_ptr.vmem [resolvable:$true] %s1072
          %1078 = dma.vmem_to_hbm [thread:$0]  %s1073, 512, %s1071, %s1049, 128, 128, 8
        $region60: #{tpu_custom_call.1} parent=51 // pred_fallthru
          _
        // Predicated region
        $region61: #{tpu_custom_call.1} parent=51 // pred_check
          %p1079 = pneg %p253
        $region62: #{tpu_custom_call.1} parent=51 // pred_check_branch
          %1081 = sbr.rel (%p1079) target = $region64
        $region63: #{tpu_custom_call.1} parent=51 // pred_region
          %s1082 = smul.u32 4, %s31
          %s1084 = ssub.s32 512, 512
          %1085 = vsyncadd %s1054, %s1084
          %s1086 = smul.addr %s1082, 128
          %s1087 = scalar_lea.hbm %s9, %s1086
          %s1088 = sshll.u32 %s1057, 4
          %s1089 = int_to_ptr.vmem [resolvable:$true] %s1088
          %1094 = dma.vmem_to_hbm [thread:$0]  %s1089, 512, %s1087, %s1054, 128, 128, 8
        $region64: #{tpu_custom_call.1} parent=51 // pred_fallthru
          _
        // Predicated region
        $region65: #{tpu_custom_call.1} parent=51 // pred_check
          %p1095 = pneg %p279
        $region66: #{tpu_custom_call.1} parent=51 // pred_check_branch
          %1097 = sbr.rel (%p1095) target = $region68
        $region67: #{tpu_custom_call.1} parent=51 // pred_region
          %s1098 = smul.u32 4, %s31
          %s1100 = ssub.s32 512, 512
          %1101 = vsyncadd %s1059, %s1100
          %s1102 = smul.addr %s1098, 128
          %s1103 = scalar_lea.hbm %s10, %s1102
          %s1104 = sshll.u32 %s1062, 4
          %s1105 = int_to_ptr.vmem [resolvable:$true] %s1104
          %1110 = dma.vmem_to_hbm [thread:$0]  %s1105, 512, %s1103, %s1059, 128, 128, 8
        $region68: #{tpu_custom_call.1} parent=51 // pred_fallthru
          _
      $region52: #{tpu_custom_call.1} parent=5 // pred_fallthru
        _
      %p1111 = scmp.le.s32.totalorder 2, %s26
      // Predicated region
      $region69: #{tpu_custom_call.1} parent=5 // pred_check
        %p1112 = pneg %p1111
      $region70: #{tpu_custom_call.1} parent=5 // pred_check_branch
        %1114 = sbr.rel (%p1112) target = $region72
      $region71: #{tpu_custom_call.1} parent=5 // pred_region
        %s1115 = ssub.s32 %s26, 2
        // Predicated region
        $region73: #{tpu_custom_call.1} parent=71 // pred_check
          %p1116 = pneg %p233
        $region74: #{tpu_custom_call.1} parent=71 // pred_check_branch
          %1118 = sbr.rel (%p1116) target = $region76
        $region75: #{tpu_custom_call.1} parent=71 // pred_region
          %s1119 = sand.u32 %s218, 1
          %s1120 = scalar_lea.sflag [#allocation4], %s1119
          %s1121 = sand.u32 %s218, 1
          %s1122 = smul.addr %s1121, 32
          %s1123 = scalar_lea.vmem [#allocation5], %s1122
          %1124 = dma.done %s1120, 512
        $region76: #{tpu_custom_call.1} parent=71 // pred_fallthru
          _
        // Predicated region
        $region77: #{tpu_custom_call.1} parent=71 // pred_check
          %p1125 = pneg %p259
        $region78: #{tpu_custom_call.1} parent=71 // pred_check_branch
          %1127 = sbr.rel (%p1125) target = $region80
        $region79: #{tpu_custom_call.1} parent=71 // pred_region
          %s1128 = sand.u32 %s32, 1
          %s1129 = scalar_lea.sflag [#allocation7], %s1128
          %s1130 = sand.u32 %s244, 1
          %s1131 = smul.addr %s1130, 32
          %s1132 = scalar_lea.vmem [#allocation6], %s1131
          %1133 = dma.done %s1129, 512
        $region80: #{tpu_custom_call.1} parent=71 // pred_fallthru
          _
        // Predicated region
        $region81: #{tpu_custom_call.1} parent=71 // pred_check
          %p1134 = pneg %p285
        $region82: #{tpu_custom_call.1} parent=71 // pred_check_branch
          %1136 = sbr.rel (%p1134) target = $region84
        $region83: #{tpu_custom_call.1} parent=71 // pred_region
          %s1137 = sand.u32 %s32, 1
          %s1138 = scalar_lea.sflag [#allocation7], %s1137
          %s1139 = sand.u32 %s270, 1
          %s1140 = smul.addr %s1139, 32
          %s1141 = scalar_lea.vmem [#allocation8], %s1140
          %1142 = dma.done %s1138, 512
        $region84: #{tpu_custom_call.1} parent=71 // pred_fallthru
          _
      $region72: #{tpu_custom_call.1} parent=5 // pred_fallthru
        _
    $region6: #{tpu_custom_call.1} parent=1 // loop_footer
      %s30 = sadd.s32 1, %s26
    $region7: #{tpu_custom_call.1} parent=1 // loop_footer_branch
      %25 = sbr.rel target = $region3
    $region8: #{tpu_custom_call.1} parent=1 // loop_exit
      _
    %1143 = vsyncpa [#allocation3], 1
    %s1144 = scalar_lea.sflag [#allocation3], 1
    %1145 = vsyncpa %s1144, 1
    %1146 = vsyncpa [#allocation4], 1
    %s1147 = scalar_lea.sflag [#allocation4], 1
    %1148 = vsyncpa %s1147, 1
    %1149 = vsyncpa [#allocation7], 1
    %s1150 = scalar_lea.sflag [#allocation7], 1
    %1151 = vsyncpa %s1150, 1

</llo_original>
